<compile_context>
chip_gen: v5e
topology: v5e:2x2
jax: 0.10.0
libtpu: 0.0.40
codegen_flags: <defaults>
</compile_context>

<pallas_src>
import functools

import jax
import jax.numpy as jnp
from jax.experimental import pallas as pl
from jax.experimental.pallas import tpu as pltpu


def _gemm_scale_bn_kernel(x_ref, w_ref, vec_ref, o_ref, *, eps, inv_b):
    # Grid: (N // tn,).  Everything needed for one output tile is resident.
    # bf16 operands, f32 accumulation on the MXU.
    y = jnp.dot(x_ref[...], w_ref[...], preferred_element_type=jnp.float32)

    vec = vec_ref[...]                  # (3, tn) stacked: scale, gamma, beta
    scale = vec[0:1, :]
    gamma = vec[1:2, :]
    beta = vec[2:3, :]

    # Batch statistics of y (bias cancels; scale is folded in afterwards).
    mean = jnp.sum(y, axis=0, keepdims=True) * inv_b          # (1, tn)
    centered = y - mean                                        # (B, tn)
    var = jnp.sum(centered * centered, axis=0, keepdims=True) * inv_b  # (1, tn)

    # Fold all per-feature factors into a single (1, tn) coefficient:
    #   out = (y*s - mean(y*s)) * rsqrt(var(y*s)+eps) * gamma + beta
    #       = (y - mean(y)) * [s*gamma*rsqrt(s^2*var(y)+eps)] + beta
    coef = scale * gamma * jax.lax.rsqrt(scale * scale * var + eps)
    o_ref[...] = centered * coef + beta


def gemm_scale_bn(x, w_t, bias, gamma, beta, scale, *, eps=1e-5, tn=256):
    """x: (B, K) f32, w_t: (K, N) f32, bias/gamma/beta/scale: (N,) f32.

    `bias` is accepted for interface parity with nn.Linear but is mathematically
    cancelled by the batch-norm mean subtraction, so it is not streamed.
    """
    B, K = x.shape
    K2, N = w_t.shape
    assert K == K2
    tn = min(tn, N)
    assert N % tn == 0, "out_features must be divisible by tn"
    del bias  # exactly cancelled by the per-feature mean subtraction

    # Real VMEM footprint: double-buffered weight + vec + output tiles, plus the
    # (resident, but conservatively also double-buffered) activation tile.
    vmem_bytes = 2 * (B * K * 2 + K * tn * 2 + 3 * tn * 4 + B * tn * 4)
    assert vmem_bytes < 32 * 1024 * 1024, (
        f"VMEM footprint {vmem_bytes} exceeds scoped budget; shrink tn or tile K")

    # bf16 streaming of the bandwidth-dominant operands.
    x_bf = x.astype(jnp.bfloat16)
    w_bf = w_t.astype(jnp.bfloat16)
    # One stacked (3, N) vector input instead of three padded (1, N) streams.
    vec = jnp.stack([scale, gamma, beta], axis=0).astype(jnp.float32)

    kernel = functools.partial(_gemm_scale_bn_kernel, eps=eps, inv_b=1.0 / B)

    cost = pl.CostEstimate(
        flops=2 * B * K * N + 8 * B * N,
        transcendentals=N,
        bytes_accessed=(B * K + K * N) * 2 + (3 * N + B * N) * 4,
    )

    return pl.pallas_call(
        kernel,
        out_shape=jax.ShapeDtypeStruct((B, N), jnp.float32),
        grid_spec=pltpu.PrefetchScalarGridSpec(
            num_scalar_prefetch=0,
            grid=(N // tn,),
            in_specs=[
                pl.BlockSpec((B, K), lambda j: (0, 0)),    # x (full, resident)
                pl.BlockSpec((K, tn), lambda j: (0, j)),   # W^T (streamed, bf16)
                pl.BlockSpec((3, tn), lambda j: (0, j)),   # scale/gamma/beta
            ],
            out_specs=pl.BlockSpec((B, tn), lambda j: (0, j)),
        ),
        compiler_params=pltpu.CompilerParams(
            dimension_semantics=("parallel",)),
        cost_estimate=cost,
    )(x_bf, w_bf, vec)


def reference(x, w_t, bias, gamma, beta, scale, eps=1e-5, matmul_dtype=None):
    """Pure-JAX reference of the module forward.

    matmul_dtype=None  -> exact f32 module math.
    matmul_dtype=bf16  -> same bf16-operand / f32-accumulate matmul as the kernel.
    """
    if matmul_dtype is None:
        y = x @ w_t
    else:
        y = jnp.dot(x.astype(matmul_dtype), w_t.astype(matmul_dtype),
                    preferred_element_type=jnp.float32)
    y = y + bias
    ys = y * scale
    mu = jnp.mean(ys, axis=0, keepdims=True)
    var = jnp.mean((ys - mu) ** 2, axis=0, keepdims=True)
    return (ys - mu) * jax.lax.rsqrt(var + eps) * gamma + beta


if __name__ == "__main__":
    # Module feature dims (in_features=1024, out_features=512), small batch.
    batch, in_features, out_features = 16, 1024, 512
    eps = 1e-5

    key = jax.random.PRNGKey(0)
    kx, kw, kb, ks = jax.random.split(key, 4)

    x = jax.random.normal(kx, (batch, in_features), dtype=jnp.float32)
    # nn.Linear weight is (out, in); store transposed (in, out) for the GEMM.
    w = jax.random.normal(kw, (out_features, in_features), jnp.float32) * 0.03
    w_t = jnp.asarray(w.T)
    bias = jax.random.normal(kb, (out_features,), jnp.float32) * 0.03
    scale = jax.random.normal(ks, (out_features,), jnp.float32)
    gamma = jnp.ones((out_features,), jnp.float32)   # batch_norm_weight init
    beta = jnp.zeros((out_features,), jnp.float32)   # batch_norm_bias init

    fused = jax.jit(functools.partial(gemm_scale_bn, eps=eps, tn=256))
    out = jax.block_until_ready(fused(x, w_t, bias, gamma, beta, scale))

    # Strict check: same bf16-operand / f32-accumulate matmul precision.
    ref_bf = reference(x, w_t, bias, gamma, beta, scale, eps=eps,
                       matmul_dtype=jnp.bfloat16)
    assert jnp.allclose(out, ref_bf, atol=2e-3, rtol=2e-3), (
        float(jnp.max(jnp.abs(out - ref_bf))))

    # Loose check: drift of the bf16 streaming vs. the exact f32 module forward.
    ref_f32 = reference(x, w_t, bias, gamma, beta, scale, eps=eps)
    assert float(jnp.max(jnp.abs(out - ref_f32))) < 0.1

    print("KERNEL_OK")
</pallas_src>

<mosaic_0001>
module attributes {stable_mosaic.version = 11 : i64} {
  func.func @_gemm_scale_bn_kernel(%arg0: i32, %arg1: memref<16x1024xbf16, #tpu.memory_space<vmem>>, %arg2: memref<1024x256xbf16, #tpu.memory_space<vmem>>, %arg3: memref<3x256xf32, #tpu.memory_space<vmem>>, %arg4: memref<16x256xf32, #tpu.memory_space<vmem>>) attributes {dimension_semantics = [#tpu.dimension_semantics<parallel>], iteration_bounds = array<i64: 2>, scalar_prefetch = 0 : i64, scratch_operands = 0 : i64, tpu.core_type = #tpu.core_type<tc>, window_params = [{pipeline_mode = #tpu.pipeline_mode<synchronous>, transform_indices = @transform_0, window_bounds = array<i64: 16, 1024>}, {transform_indices = @transform_1, window_bounds = array<i64: 1024, 256>}, {transform_indices = @transform_2, window_bounds = array<i64: 3, 256>}, {transform_indices = @transform_3, window_bounds = array<i64: 16, 256>}]} {
    %c0 = arith.constant 0 : index
    %c0_0 = arith.constant 0 : index
    %0 = vector.load %arg1[%c0, %c0_0] : memref<16x1024xbf16, #tpu.memory_space<vmem>>, vector<16x1024xbf16>
    %c0_1 = arith.constant 0 : index
    %c0_2 = arith.constant 0 : index
    %1 = vector.load %arg2[%c0_1, %c0_2] : memref<1024x256xbf16, #tpu.memory_space<vmem>>, vector<1024x256xbf16>
    %cst = arith.constant dense<0.000000e+00> : vector<16x256xf32>
    %2 = tpu.matmul %0, %1, %cst {dimension_numbers = #tpu.dot_dimension_numbers<[1], [0], [0], [1], [0, 0, 1, 1], [], []>} : vector<16x1024xbf16>, vector<1024x256xbf16>, vector<16x256xf32> -> vector<16x256xf32>
    %c0_3 = arith.constant 0 : index
    %c0_4 = arith.constant 0 : index
    %3 = vector.load %arg3[%c0_3, %c0_4] : memref<3x256xf32, #tpu.memory_space<vmem>>, vector<3x256xf32>
    %4 = vector.extract_strided_slice %3 {offsets = [0, 0], sizes = [1, 256], strides = [1, 1]} : vector<3x256xf32> to vector<1x256xf32>
    %5 = vector.extract_strided_slice %3 {offsets = [1, 0], sizes = [1, 256], strides = [1, 1]} : vector<3x256xf32> to vector<1x256xf32>
    %6 = vector.extract_strided_slice %3 {offsets = [2, 0], sizes = [1, 256], strides = [1, 1]} : vector<3x256xf32> to vector<1x256xf32>
    %cst_5 = arith.constant dense<0.000000e+00> : vector<256xf32>
    %7 = vector.multi_reduction <add>, %2, %cst_5 [0] : vector<16x256xf32> to vector<256xf32>
    %8 = vector.shape_cast %7 : vector<256xf32> to vector<1x256xf32>
    %cst_6 = arith.constant 6.250000e-02 : f32
    %9 = vector.broadcast %cst_6 : f32 to vector<1x256xf32>
    %10 = arith.mulf %8, %9 : vector<1x256xf32>
    %11 = vector.broadcast %10 : vector<1x256xf32> to vector<16x256xf32>
    %12 = arith.subf %2, %11 : vector<16x256xf32>
    %13 = arith.mulf %12, %12 : vector<16x256xf32>
    %cst_7 = arith.constant dense<0.000000e+00> : vector<256xf32>
    %14 = vector.multi_reduction <add>, %13, %cst_7 [0] : vector<16x256xf32> to vector<256xf32>
    %15 = vector.shape_cast %14 : vector<256xf32> to vector<1x256xf32>
    %cst_8 = arith.constant 6.250000e-02 : f32
    %16 = vector.broadcast %cst_8 : f32 to vector<1x256xf32>
    %17 = arith.mulf %15, %16 : vector<1x256xf32>
    %18 = arith.mulf %4, %5 : vector<1x256xf32>
    %19 = arith.mulf %4, %4 : vector<1x256xf32>
    %20 = arith.mulf %19, %17 : vector<1x256xf32>
    %cst_9 = arith.constant 9.99999974E-6 : f32
    %21 = vector.broadcast %cst_9 : f32 to vector<1x256xf32>
    %22 = arith.addf %20, %21 : vector<1x256xf32>
    %23 = math.rsqrt %22 : vector<1x256xf32>
    %24 = arith.mulf %18, %23 : vector<1x256xf32>
    %25 = vector.broadcast %24 : vector<1x256xf32> to vector<16x256xf32>
    %26 = arith.mulf %12, %25 : vector<16x256xf32>
    %27 = vector.broadcast %6 : vector<1x256xf32> to vector<16x256xf32>
    %28 = arith.addf %26, %27 : vector<16x256xf32>
    %c0_10 = arith.constant 0 : index
    %c0_11 = arith.constant 0 : index
    %29 = vector.load %arg4[%c0_10, %c0_11] : memref<16x256xf32, #tpu.memory_space<vmem>>, vector<16x256xf32>
    tpu.vector_store %arg4[%c0_10, %c0_11], %28 {strides = array<i32>} : memref<16x256xf32, #tpu.memory_space<vmem>>, vector<16x256xf32>,
    return
  }
  func.func @transform_0(%arg0: i32) -> (i32, i32) {
    %c0_i32 = arith.constant 0 : i32
    %c0_i32_0 = arith.constant 0 : i32
    %c0_i32_1 = arith.constant 0 : i32
    return %c0_i32, %c0_i32_0 : i32, i32
  }
  func.func @transform_1(%arg0: i32) -> (i32, i32) {
    %c0_i32 = arith.constant 0 : i32
    %c0_i32_0 = arith.constant 0 : i32
    return %c0_i32, %arg0 : i32, i32
  }
  func.func @transform_2(%arg0: i32) -> (i32, i32) {
    %c0_i32 = arith.constant 0 : i32
    %c0_i32_0 = arith.constant 0 : i32
    return %c0_i32, %arg0 : i32, i32
  }
  func.func @transform_3(%arg0: i32) -> (i32, i32) {
    %c0_i32 = arith.constant 0 : i32
    %c0_i32_0 = arith.constant 0 : i32
    return %c0_i32, %arg0 : i32, i32
  }
}

</mosaic_0001>

<llo_original>
// kernel: gemm_scale_bn.1
$region0: #{gemm_scale_bn.1}
  #allocation0 [shape = 'u32[]', space=smem, size = 0x4, offset = 0x4, fixed_abs, tag = 'smem constant byte address 0x4 - core index']
  #allocation1 [shape = 'u32[72,128]{1,0:T(1,128)}', space=vmem, size = 0x9000, scoped, tag = 'internal scratch']
  %s0 = inlined_call_operand.vmem [shape: bf16[16,1024], index: 0, kind: input, shape index: {}]
  %s1 = inlined_call_operand.vmem [shape: bf16[1024,512], index: 1, kind: input, shape index: {}]
  %s2 = inlined_call_operand.vmem [shape: f32[3,512], index: 2, kind: input, shape index: {}]
  %s3 = inlined_call_operand.hbm [shape: f32[16,512], index: 3, kind: output, shape index: {}]
  %s4 = sld [smem:[#allocation0]]
  $region83: #{gemm_scale_bn.1} parent=0
    _
  %s6 = ssub.s32 1, %s4
  %s7 = scalar_select 0, %s6, %s4
  $region1: #{gemm_scale_bn.1} parent=0
    #allocation2 [shape = 'u8[1048576]{0}', space=vmem, size = 0x100000, scoped, tag = 'input window, operand 1']
    #allocation3 [shape = 'u8[32768]{0}', space=vmem, size = 0x8000, scoped, tag = 'output window, operand 0']
    #allocation4 [shape = 's32[2]{0}', space=sflag, size = 0x8, scoped, tag = 'scoped memory for gemm_scale_bn.1']
    %8 = vsyncpa [#allocation4], 0
    %s9 = scalar_lea.sflag [#allocation4], 1
    %10 = vsyncpa %s9, 0
    loop: start=0, step=1, limit=4
    $region2: #{gemm_scale_bn.1} parent=1 // loop_pre_header
      _
    $region3: #{gemm_scale_bn.1} parent=1 // loop_header
      %s12 = sphi 0, %s16
      %p13 = scmp.ge.s32.totalorder %s12, 4
      %s20 = sphi 0, %s20
      %s22 = sphi 0, %s20
      %s23 = sphi 0, %s22
      %s37 = sphi 0, %s23
      %s43 = sphi 0, %s45
      %s46 = sphi 0, %s43
      %s47 = sphi 0, %s46
      %s63 = sphi 0, %s47
      %s69 = sphi 0, %s71
      %s72 = sphi 0, %s69
      %s73 = sphi 0, %s72
      %s89 = sphi 0, %s73
      %s95 = sphi 0, %s97
      %s98 = sphi 0, %s95
      %s99 = sphi 0, %s98
      %s115 = sphi 0, %s99
    $region4: #{gemm_scale_bn.1} parent=1 // loop_header_branch
      %15 = sbr.rel (%p13) target = $region8
    $region5: #{gemm_scale_bn.1} parent=1 // loop_body
      %s17 = ssub.s32 %s12, 1
      %s18 = ssub.s32 %s12, 2
      %s19 = sadd.s32 %s12, 1
      %s21 = sadd.s32 %s20, 1
      %p24 = scmp.eq.s32.totalorder %s12, 1
      %p25 = scmp.ne.s32.totalorder %s20, %s22
      %p26 = scmp.eq.s32.totalorder %s12, 0
      %p27 = por %p25, %p26
      %p28 = scmp.ne.s32.totalorder %s20, %s22
      %p29 = scmp.eq.s32.totalorder %s17, 1
      %p30 = por %p28, %p29
      %p31 = scmp.ne.s32.totalorder %s22, %s23
      %p32 = scmp.eq.s32.totalorder %s17, 0
      %p33 = por %p31, %p32
      %p34 = scmp.ne.s32.totalorder %s22, %s23
      %p35 = scmp.eq.s32.totalorder %s18, 1
      %p36 = por %p34, %p35
      %p38 = scmp.ne.s32.totalorder %s23, %s37
      %p39 = scmp.eq.s32.totalorder %s18, 0
      %p40 = por %p38, %p39
      %s41 = ssub.s32 %s12, %s19
      %p42 = scmp.eq.s32.totalorder %s41, 0
      %s44 = sadd.s32 %s43, 1
      %s45 = scalar_select %p42, %s43, %s44
      %p48 = pneg %p42
      %p49 = scmp.eq.s32.totalorder %s12, 1
      %p50 = por %p48, %p49
      %p51 = scmp.ne.s32.totalorder %s43, %s46
      %p52 = scmp.eq.s32.totalorder %s12, 0
      %p53 = por %p51, %p52
      %p54 = scmp.ne.s32.totalorder %s43, %s46
      %p55 = scmp.eq.s32.totalorder %s17, 1
      %p56 = por %p54, %p55
      %p57 = scmp.ne.s32.totalorder %s46, %s47
      %p58 = scmp.eq.s32.totalorder %s17, 0
      %p59 = por %p57, %p58
      %p60 = scmp.ne.s32.totalorder %s46, %s47
      %p61 = scmp.eq.s32.totalorder %s18, 1
      %p62 = por %p60, %p61
      %p64 = scmp.ne.s32.totalorder %s47, %s63
      %p65 = scmp.eq.s32.totalorder %s18, 0
      %p66 = por %p64, %p65
      %s67 = ssub.s32 %s12, %s19
      %p68 = scmp.eq.s32.totalorder %s67, 0
      %s70 = sadd.s32 %s69, 1
      %s71 = scalar_select %p68, %s69, %s70
      %p74 = pneg %p68
      %p75 = scmp.eq.s32.totalorder %s12, 1
      %p76 = por %p74, %p75
      %p77 = scmp.ne.s32.totalorder %s69, %s72
      %p78 = scmp.eq.s32.totalorder %s12, 0
      %p79 = por %p77, %p78
      %p80 = scmp.ne.s32.totalorder %s69, %s72
      %p81 = scmp.eq.s32.totalorder %s17, 1
      %p82 = por %p80, %p81
      %p83 = scmp.ne.s32.totalorder %s72, %s73
      %p84 = scmp.eq.s32.totalorder %s17, 0
      %p85 = por %p83, %p84
      %p86 = scmp.ne.s32.totalorder %s72, %s73
      %p87 = scmp.eq.s32.totalorder %s18, 1
      %p88 = por %p86, %p87
      %p90 = scmp.ne.s32.totalorder %s73, %s89
      %p91 = scmp.eq.s32.totalorder %s18, 0
      %p92 = por %p90, %p91
      %s93 = ssub.s32 %s12, %s19
      %p94 = scmp.eq.s32.totalorder %s93, 0
      %s96 = sadd.s32 %s95, 1
      %s97 = scalar_select %p94, %s95, %s96
      %p100 = pneg %p94
      %p101 = scmp.eq.s32.totalorder %s12, 1
      %p102 = por %p100, %p101
      %p103 = scmp.ne.s32.totalorder %s95, %s98
      %p104 = scmp.eq.s32.totalorder %s12, 0
      %p105 = por %p103, %p104
      %p106 = scmp.ne.s32.totalorder %s95, %s98
      %p107 = scmp.eq.s32.totalorder %s17, 1
      %p108 = por %p106, %p107
      %p109 = scmp.ne.s32.totalorder %s98, %s99
      %p110 = scmp.eq.s32.totalorder %s17, 0
      %p111 = por %p109, %p110
      %p112 = scmp.ne.s32.totalorder %s98, %s99
      %p113 = scmp.eq.s32.totalorder %s18, 1
      %p114 = por %p112, %p113
      %p116 = scmp.ne.s32.totalorder %s99, %s115
      %p117 = scmp.eq.s32.totalorder %s18, 0
      %p118 = por %p116, %p117
      %p119 = scmp.le.s32.totalorder 1, %s12
      %p120 = scmp.lt.s32.totalorder %s12, 3
      %p121 = pnand %p119, %p120
      %p122 = pneg %p121
      // Predicated region
      $region9: #{gemm_scale_bn.1} parent=5 // pred_check
        _
      $region10: #{gemm_scale_bn.1} parent=5 // pred_check_branch
        %124 = sbr.rel (%p121) target = $region12
      $region11: #{gemm_scale_bn.1} parent=5 // pred_region
        %s125 = ssub.s32 %s12, 1
        // Predicated region
        $region13: #{gemm_scale_bn.1} parent=11 // pred_check
          %p126 = pneg %p33
        $region14: #{gemm_scale_bn.1} parent=11 // pred_check_branch
          %128 = sbr.rel (%p126) target = $region16
        $region15: #{gemm_scale_bn.1} parent=11 // pred_region
          _
        $region16: #{gemm_scale_bn.1} parent=11 // pred_fallthru
          _
      $region12: #{gemm_scale_bn.1} parent=5 // pred_fallthru
        _
      %p129 = scmp.lt.s32.totalorder %s12, 2
      // Predicated region
      $region17: #{gemm_scale_bn.1} parent=5 // pred_check
        %p130 = pneg %p129
      $region18: #{gemm_scale_bn.1} parent=5 // pred_check_branch
        %132 = sbr.rel (%p130) target = $region20
      $region19: #{gemm_scale_bn.1} parent=5 // pred_region
        // Predicated region
        $region21: #{gemm_scale_bn.1} parent=19 // pred_check
          %p133 = pneg %p53
        $region22: #{gemm_scale_bn.1} parent=19 // pred_check_branch
          %135 = sbr.rel (%p133) target = $region24
        $region23: #{gemm_scale_bn.1} parent=19 // pred_region
          %s136 = sand.u32 %s43, 1
          %s137 = sand.u32 %s43, 1
          %s138 = smul.addr %s137, 1024
          %s139 = scalar_lea.vmem [#allocation2], %s138
          %s140 = smul.u32 2, %s12
          %s141 = smul.addr %s140, 4
          %s142 = scalar_lea.vmem %s1, %s141
          // Predicated region
          $region25: #{gemm_scale_bn.1} parent=23 // pred_check
            _
          $region26: #{gemm_scale_bn.1} parent=23 // pred_check_branch
            %144 = sbr.rel (0) target = $region28
          $region27: #{gemm_scale_bn.1} parent=23 // pred_region
            // Predicated region
            $region29: #{gemm_scale_bn.1} parent=27 // pred_check
              _
            $region30: #{gemm_scale_bn.1} parent=27 // pred_check_branch
              %146 = sbr.rel (0) target = $region32
            $region31: #{gemm_scale_bn.1} parent=27 // pred_region
              // Predicated region
              $region44: #{gemm_scale_bn.1} parent=31 // pred_check
                _
              $region45: #{gemm_scale_bn.1} parent=31 // pred_check_branch
                %416 = sbr.rel (0) target = $region47
              $region46: #{gemm_scale_bn.1} parent=31 // pred_region
                loop: start=0, step=1, limit=1
                $region48: #{gemm_scale_bn.1} parent=46 // loop_pre_header
                  _
                $region49: #{gemm_scale_bn.1} parent=46 // loop_header
                  %s418 = sphi 0, %s422
                  %p419 = scmp.ge.s32.totalorder %s418, 1
                  %s423 = sphi %s142, %s142
                  %s424 = sphi %s139, %s139
                $region50: #{gemm_scale_bn.1} parent=46 // loop_header_branch
                  %421 = sbr.rel (%p419) target = $region54
                $region51: #{gemm_scale_bn.1} parent=46 // loop_body
                  %v425 = vld [vmem:[%s423] sm:$0xff]
                  %426 = vst [vmem:[%s424] sm:$0xff] %v425
                  %v427 = vld [vmem:[%s423 + $0x10] sm:$0xff]
                  %428 = vst [vmem:[%s424 + $0x8] sm:$0xff] %v427
                  %v429 = vld [vmem:[%s423 + $0x20] sm:$0xff]
                  %430 = vst [vmem:[%s424 + $0x10] sm:$0xff] %v429
                  %v431 = vld [vmem:[%s423 + $0x30] sm:$0xff]
                  %432 = vst [vmem:[%s424 + $0x18] sm:$0xff] %v431
                  %v433 = vld [vmem:[%s423 + $0x40] sm:$0xff]
                  %434 = vst [vmem:[%s424 + $0x20] sm:$0xff] %v433
                  %v435 = vld [vmem:[%s423 + $0x50] sm:$0xff]
                  %436 = vst [vmem:[%s424 + $0x28] sm:$0xff] %v435
                  %v437 = vld [vmem:[%s423 + $0x60] sm:$0xff]
                  %438 = vst [vmem:[%s424 + $0x30] sm:$0xff] %v437
                  %v439 = vld [vmem:[%s423 + $0x70] sm:$0xff]
                  %440 = vst [vmem:[%s424 + $0x38] sm:$0xff] %v439
                  %v441 = vld [vmem:[%s423 + $0x80] sm:$0xff]
                  %442 = vst [vmem:[%s424 + $0x40] sm:$0xff] %v441
                  %v443 = vld [vmem:[%s423 + $0x90] sm:$0xff]
                  %444 = vst [vmem:[%s424 + $0x48] sm:$0xff] %v443
                  %v445 = vld [vmem:[%s423 + $0xa0] sm:$0xff]
                  %446 = vst [vmem:[%s424 + $0x50] sm:$0xff] %v445
                  %v447 = vld [vmem:[%s423 + $0xb0] sm:$0xff]
                  %448 = vst [vmem:[%s424 + $0x58] sm:$0xff] %v447
                  %v449 = vld [vmem:[%s423 + $0xc0] sm:$0xff]
                  %450 = vst [vmem:[%s424 + $0x60] sm:$0xff] %v449
                  %v451 = vld [vmem:[%s423 + $0xd0] sm:$0xff]
                  %452 = vst [vmem:[%s424 + $0x68] sm:$0xff] %v451
                  %v453 = vld [vmem:[%s423 + $0xe0] sm:$0xff]
                  %454 = vst [vmem:[%s424 + $0x70] sm:$0xff] %v453
                  %v455 = vld [vmem:[%s423 + $0xf0] sm:$0xff]
                  %456 = vst [vmem:[%s424 + $0x78] sm:$0xff] %v455
                  %v457 = vld [vmem:[%s423 + $0x100] sm:$0xff]
                  %458 = vst [vmem:[%s424 + $0x80] sm:$0xff] %v457
                  %v459 = vld [vmem:[%s423 + $0x110] sm:$0xff]
                  %460 = vst [vmem:[%s424 + $0x88] sm:$0xff] %v459
                  %v461 = vld [vmem:[%s423 + $0x120] sm:$0xff]
                  %462 = vst [vmem:[%s424 + $0x90] sm:$0xff] %v461
                  %v463 = vld [vmem:[%s423 + $0x130] sm:$0xff]
                  %464 = vst [vmem:[%s424 + $0x98] sm:$0xff] %v463
                  %v465 = vld [vmem:[%s423 + $0x140] sm:$0xff]
                  %466 = vst [vmem:[%s424 + $0xa0] sm:$0xff] %v465
                  %v467 = vld [vmem:[%s423 + $0x150] sm:$0xff]
                  %468 = vst [vmem:[%s424 + $0xa8] sm:$0xff] %v467
                  %v469 = vld [vmem:[%s423 + $0x160] sm:$0xff]
                  %470 = vst [vmem:[%s424 + $0xb0] sm:$0xff] %v469
                  %v471 = vld [vmem:[%s423 + $0x170] sm:$0xff]
                  %472 = vst [vmem:[%s424 + $0xb8] sm:$0xff] %v471
                  %v473 = vld [vmem:[%s423 + $0x180] sm:$0xff]
                  %474 = vst [vmem:[%s424 + $0xc0] sm:$0xff] %v473
                  %v475 = vld [vmem:[%s423 + $0x190] sm:$0xff]
                  %476 = vst [vmem:[%s424 + $0xc8] sm:$0xff] %v475
                  %v477 = vld [vmem:[%s423 + $0x1a0] sm:$0xff]
                  %478 = vst [vmem:[%s424 + $0xd0] sm:$0xff] %v477
                  %v479 = vld [vmem:[%s423 + $0x1b0] sm:$0xff]
                  %480 = vst [vmem:[%s424 + $0xd8] sm:$0xff] %v479
                  %v481 = vld [vmem:[%s423 + $0x1c0] sm:$0xff]
                  %482 = vst [vmem:[%s424 + $0xe0] sm:$0xff] %v481
                  %v483 = vld [vmem:[%s423 + $0x1d0] sm:$0xff]
                  %484 = vst [vmem:[%s424 + $0xe8] sm:$0xff] %v483
                  %v485 = vld [vmem:[%s423 + $0x1e0] sm:$0xff]
                  %486 = vst [vmem:[%s424 + $0xf0] sm:$0xff] %v485
                  %v487 = vld [vmem:[%s423 + $0x1f0] sm:$0xff]
                  %488 = vst [vmem:[%s424 + $0xf8] sm:$0xff] %v487
                  %v489 = vld [vmem:[%s423 + $0x200] sm:$0xff]
                  %490 = vst [vmem:[%s424 + $0x100] sm:$0xff] %v489
                  %v491 = vld [vmem:[%s423 + $0x210] sm:$0xff]
                  %492 = vst [vmem:[%s424 + $0x108] sm:$0xff] %v491
                  %v493 = vld [vmem:[%s423 + $0x220] sm:$0xff]
                  %494 = vst [vmem:[%s424 + $0x110] sm:$0xff] %v493
                  %v495 = vld [vmem:[%s423 + $0x230] sm:$0xff]
                  %496 = vst [vmem:[%s424 + $0x118] sm:$0xff] %v495
                  %v497 = vld [vmem:[%s423 + $0x240] sm:$0xff]
                  %498 = vst [vmem:[%s424 + $0x120] sm:$0xff] %v497
                  %v499 = vld [vmem:[%s423 + $0x250] sm:$0xff]
                  %500 = vst [vmem:[%s424 + $0x128] sm:$0xff] %v499
                  %v501 = vld [vmem:[%s423 + $0x260] sm:$0xff]
                  %502 = vst [vmem:[%s424 + $0x130] sm:$0xff] %v501
                  %v503 = vld [vmem:[%s423 + $0x270] sm:$0xff]
                  %504 = vst [vmem:[%s424 + $0x138] sm:$0xff] %v503
                  %v505 = vld [vmem:[%s423 + $0x280] sm:$0xff]
                  %506 = vst [vmem:[%s424 + $0x140] sm:$0xff] %v505
                  %v507 = vld [vmem:[%s423 + $0x290] sm:$0xff]
                  %508 = vst [vmem:[%s424 + $0x148] sm:$0xff] %v507
                  %v509 = vld [vmem:[%s423 + $0x2a0] sm:$0xff]
                  %510 = vst [vmem:[%s424 + $0x150] sm:$0xff] %v509
                  %v511 = vld [vmem:[%s423 + $0x2b0] sm:$0xff]
                  %512 = vst [vmem:[%s424 + $0x158] sm:$0xff] %v511
                  %v513 = vld [vmem:[%s423 + $0x2c0] sm:$0xff]
                  %514 = vst [vmem:[%s424 + $0x160] sm:$0xff] %v513
                  %v515 = vld [vmem:[%s423 + $0x2d0] sm:$0xff]
                  %516 = vst [vmem:[%s424 + $0x168] sm:$0xff] %v515
                  %v517 = vld [vmem:[%s423 + $0x2e0] sm:$0xff]
                  %518 = vst [vmem:[%s424 + $0x170] sm:$0xff] %v517
                  %v519 = vld [vmem:[%s423 + $0x2f0] sm:$0xff]
                  %520 = vst [vmem:[%s424 + $0x178] sm:$0xff] %v519
                  %v521 = vld [vmem:[%s423 + $0x300] sm:$0xff]
                  %522 = vst [vmem:[%s424 + $0x180] sm:$0xff] %v521
                  %v523 = vld [vmem:[%s423 + $0x310] sm:$0xff]
                  %524 = vst [vmem:[%s424 + $0x188] sm:$0xff] %v523
                  %v525 = vld [vmem:[%s423 + $0x320] sm:$0xff]
                  %526 = vst [vmem:[%s424 + $0x190] sm:$0xff] %v525
                  %v527 = vld [vmem:[%s423 + $0x330] sm:$0xff]
                  %528 = vst [vmem:[%s424 + $0x198] sm:$0xff] %v527
                  %v529 = vld [vmem:[%s423 + $0x340] sm:$0xff]
                  %530 = vst [vmem:[%s424 + $0x1a0] sm:$0xff] %v529
                  %v531 = vld [vmem:[%s423 + $0x350] sm:$0xff]
                  %532 = vst [vmem:[%s424 + $0x1a8] sm:$0xff] %v531
                  %v533 = vld [vmem:[%s423 + $0x360] sm:$0xff]
                  %534 = vst [vmem:[%s424 + $0x1b0] sm:$0xff] %v533
                  %v535 = vld [vmem:[%s423 + $0x370] sm:$0xff]
                  %536 = vst [vmem:[%s424 + $0x1b8] sm:$0xff] %v535
                  %v537 = vld [vmem:[%s423 + $0x380] sm:$0xff]
                  %538 = vst [vmem:[%s424 + $0x1c0] sm:$0xff] %v537
                  %v539 = vld [vmem:[%s423 + $0x390] sm:$0xff]
                  %540 = vst [vmem:[%s424 + $0x1c8] sm:$0xff] %v539
                  %v541 = vld [vmem:[%s423 + $0x3a0] sm:$0xff]
                  %542 = vst [vmem:[%s424 + $0x1d0] sm:$0xff] %v541
                  %v543 = vld [vmem:[%s423 + $0x3b0] sm:$0xff]
                  %544 = vst [vmem:[%s424 + $0x1d8] sm:$0xff] %v543
                  %v545 = vld [vmem:[%s423 + $0x3c0] sm:$0xff]
                  %546 = vst [vmem:[%s424 + $0x1e0] sm:$0xff] %v545
                  %v547 = vld [vmem:[%s423 + $0x3d0] sm:$0xff]
                  %548 = vst [vmem:[%s424 + $0x1e8] sm:$0xff] %v547
                  %v549 = vld [vmem:[%s423 + $0x3e0] sm:$0xff]
                  %550 = vst [vmem:[%s424 + $0x1f0] sm:$0xff] %v549
                  %v551 = vld [vmem:[%s423 + $0x3f0] sm:$0xff]
                  %552 = vst [vmem:[%s424 + $0x1f8] sm:$0xff] %v551
                  %v553 = vld [vmem:[%s423 + $0x400] sm:$0xff]
                  %554 = vst [vmem:[%s424 + $0x200] sm:$0xff] %v553
                  %v555 = vld [vmem:[%s423 + $0x410] sm:$0xff]
                  %556 = vst [vmem:[%s424 + $0x208] sm:$0xff] %v555
                  %v557 = vld [vmem:[%s423 + $0x420] sm:$0xff]
                  %558 = vst [vmem:[%s424 + $0x210] sm:$0xff] %v557
                  %v559 = vld [vmem:[%s423 + $0x430] sm:$0xff]
                  %560 = vst [vmem:[%s424 + $0x218] sm:$0xff] %v559
                  %v561 = vld [vmem:[%s423 + $0x440] sm:$0xff]
                  %562 = vst [vmem:[%s424 + $0x220] sm:$0xff] %v561
                  %v563 = vld [vmem:[%s423 + $0x450] sm:$0xff]
                  %564 = vst [vmem:[%s424 + $0x228] sm:$0xff] %v563
                  %v565 = vld [vmem:[%s423 + $0x460] sm:$0xff]
                  %566 = vst [vmem:[%s424 + $0x230] sm:$0xff] %v565
                  %v567 = vld [vmem:[%s423 + $0x470] sm:$0xff]
                  %568 = vst [vmem:[%s424 + $0x238] sm:$0xff] %v567
                  %v569 = vld [vmem:[%s423 + $0x480] sm:$0xff]
                  %570 = vst [vmem:[%s424 + $0x240] sm:$0xff] %v569
                  %v571 = vld [vmem:[%s423 + $0x490] sm:$0xff]
                  %572 = vst [vmem:[%s424 + $0x248] sm:$0xff] %v571
                  %v573 = vld [vmem:[%s423 + $0x4a0] sm:$0xff]
                  %574 = vst [vmem:[%s424 + $0x250] sm:$0xff] %v573
                  %v575 = vld [vmem:[%s423 + $0x4b0] sm:$0xff]
                  %576 = vst [vmem:[%s424 + $0x258] sm:$0xff] %v575
                  %v577 = vld [vmem:[%s423 + $0x4c0] sm:$0xff]
                  %578 = vst [vmem:[%s424 + $0x260] sm:$0xff] %v577
                  %v579 = vld [vmem:[%s423 + $0x4d0] sm:$0xff]
                  %580 = vst [vmem:[%s424 + $0x268] sm:$0xff] %v579
                  %v581 = vld [vmem:[%s423 + $0x4e0] sm:$0xff]
                  %582 = vst [vmem:[%s424 + $0x270] sm:$0xff] %v581
                  %v583 = vld [vmem:[%s423 + $0x4f0] sm:$0xff]
                  %584 = vst [vmem:[%s424 + $0x278] sm:$0xff] %v583
                  %v585 = vld [vmem:[%s423 + $0x500] sm:$0xff]
                  %586 = vst [vmem:[%s424 + $0x280] sm:$0xff] %v585
                  %v587 = vld [vmem:[%s423 + $0x510] sm:$0xff]
                  %588 = vst [vmem:[%s424 + $0x288] sm:$0xff] %v587
                  %v589 = vld [vmem:[%s423 + $0x520] sm:$0xff]
                  %590 = vst [vmem:[%s424 + $0x290] sm:$0xff] %v589
                  %v591 = vld [vmem:[%s423 + $0x530] sm:$0xff]
                  %592 = vst [vmem:[%s424 + $0x298] sm:$0xff] %v591
                  %v593 = vld [vmem:[%s423 + $0x540] sm:$0xff]
                  %594 = vst [vmem:[%s424 + $0x2a0] sm:$0xff] %v593
                  %v595 = vld [vmem:[%s423 + $0x550] sm:$0xff]
                  %596 = vst [vmem:[%s424 + $0x2a8] sm:$0xff] %v595
                  %v597 = vld [vmem:[%s423 + $0x560] sm:$0xff]
                  %598 = vst [vmem:[%s424 + $0x2b0] sm:$0xff] %v597
                  %v599 = vld [vmem:[%s423 + $0x570] sm:$0xff]
                  %600 = vst [vmem:[%s424 + $0x2b8] sm:$0xff] %v599
                  %v601 = vld [vmem:[%s423 + $0x580] sm:$0xff]
                  %602 = vst [vmem:[%s424 + $0x2c0] sm:$0xff] %v601
                  %v603 = vld [vmem:[%s423 + $0x590] sm:$0xff]
                  %604 = vst [vmem:[%s424 + $0x2c8] sm:$0xff] %v603
                  %v605 = vld [vmem:[%s423 + $0x5a0] sm:$0xff]
                  %606 = vst [vmem:[%s424 + $0x2d0] sm:$0xff] %v605
                  %v607 = vld [vmem:[%s423 + $0x5b0] sm:$0xff]
                  %608 = vst [vmem:[%s424 + $0x2d8] sm:$0xff] %v607
                  %v609 = vld [vmem:[%s423 + $0x5c0] sm:$0xff]
                  %610 = vst [vmem:[%s424 + $0x2e0] sm:$0xff] %v609
                  %v611 = vld [vmem:[%s423 + $0x5d0] sm:$0xff]
                  %612 = vst [vmem:[%s424 + $0x2e8] sm:$0xff] %v611
                  %v613 = vld [vmem:[%s423 + $0x5e0] sm:$0xff]
                  %614 = vst [vmem:[%s424 + $0x2f0] sm:$0xff] %v613
                  %v615 = vld [vmem:[%s423 + $0x5f0] sm:$0xff]
                  %616 = vst [vmem:[%s424 + $0x2f8] sm:$0xff] %v615
                  %v617 = vld [vmem:[%s423 + $0x600] sm:$0xff]
                  %618 = vst [vmem:[%s424 + $0x300] sm:$0xff] %v617
                  %v619 = vld [vmem:[%s423 + $0x610] sm:$0xff]
                  %620 = vst [vmem:[%s424 + $0x308] sm:$0xff] %v619
                  %v621 = vld [vmem:[%s423 + $0x620] sm:$0xff]
                  %622 = vst [vmem:[%s424 + $0x310] sm:$0xff] %v621
                  %v623 = vld [vmem:[%s423 + $0x630] sm:$0xff]
                  %624 = vst [vmem:[%s424 + $0x318] sm:$0xff] %v623
                  %v625 = vld [vmem:[%s423 + $0x640] sm:$0xff]
                  %626 = vst [vmem:[%s424 + $0x320] sm:$0xff] %v625
                  %v627 = vld [vmem:[%s423 + $0x650] sm:$0xff]
                  %628 = vst [vmem:[%s424 + $0x328] sm:$0xff] %v627
                  %v629 = vld [vmem:[%s423 + $0x660] sm:$0xff]
                  %630 = vst [vmem:[%s424 + $0x330] sm:$0xff] %v629
                  %v631 = vld [vmem:[%s423 + $0x670] sm:$0xff]
                  %632 = vst [vmem:[%s424 + $0x338] sm:$0xff] %v631
                  %v633 = vld [vmem:[%s423 + $0x680] sm:$0xff]
                  %634 = vst [vmem:[%s424 + $0x340] sm:$0xff] %v633
                  %v635 = vld [vmem:[%s423 + $0x690] sm:$0xff]
                  %636 = vst [vmem:[%s424 + $0x348] sm:$0xff] %v635
                  %v637 = vld [vmem:[%s423 + $0x6a0] sm:$0xff]
                  %638 = vst [vmem:[%s424 + $0x350] sm:$0xff] %v637
                  %v639 = vld [vmem:[%s423 + $0x6b0] sm:$0xff]
                  %640 = vst [vmem:[%s424 + $0x358] sm:$0xff] %v639
                  %v641 = vld [vmem:[%s423 + $0x6c0] sm:$0xff]
                  %642 = vst [vmem:[%s424 + $0x360] sm:$0xff] %v641
                  %v643 = vld [vmem:[%s423 + $0x6d0] sm:$0xff]
                  %644 = vst [vmem:[%s424 + $0x368] sm:$0xff] %v643
                  %v645 = vld [vmem:[%s423 + $0x6e0] sm:$0xff]
                  %646 = vst [vmem:[%s424 + $0x370] sm:$0xff] %v645
                  %v647 = vld [vmem:[%s423 + $0x6f0] sm:$0xff]
                  %648 = vst [vmem:[%s424 + $0x378] sm:$0xff] %v647
                  %v649 = vld [vmem:[%s423 + $0x700] sm:$0xff]
                  %650 = vst [vmem:[%s424 + $0x380] sm:$0xff] %v649
                  %v651 = vld [vmem:[%s423 + $0x710] sm:$0xff]
                  %652 = vst [vmem:[%s424 + $0x388] sm:$0xff] %v651
                  %v653 = vld [vmem:[%s423 + $0x720] sm:$0xff]
                  %654 = vst [vmem:[%s424 + $0x390] sm:$0xff] %v653
                  %v655 = vld [vmem:[%s423 + $0x730] sm:$0xff]
                  %656 = vst [vmem:[%s424 + $0x398] sm:$0xff] %v655
                  %v657 = vld [vmem:[%s423 + $0x740] sm:$0xff]
                  %658 = vst [vmem:[%s424 + $0x3a0] sm:$0xff] %v657
                  %v659 = vld [vmem:[%s423 + $0x750] sm:$0xff]
                  %660 = vst [vmem:[%s424 + $0x3a8] sm:$0xff] %v659
                  %v661 = vld [vmem:[%s423 + $0x760] sm:$0xff]
                  %662 = vst [vmem:[%s424 + $0x3b0] sm:$0xff] %v661
                  %v663 = vld [vmem:[%s423 + $0x770] sm:$0xff]
                  %664 = vst [vmem:[%s424 + $0x3b8] sm:$0xff] %v663
                  %v665 = vld [vmem:[%s423 + $0x780] sm:$0xff]
                  %666 = vst [vmem:[%s424 + $0x3c0] sm:$0xff] %v665
                  %v667 = vld [vmem:[%s423 + $0x790] sm:$0xff]
                  %668 = vst [vmem:[%s424 + $0x3c8] sm:$0xff] %v667
                  %v669 = vld [vmem:[%s423 + $0x7a0] sm:$0xff]
                  %670 = vst [vmem:[%s424 + $0x3d0] sm:$0xff] %v669
                  %v671 = vld [vmem:[%s423 + $0x7b0] sm:$0xff]
                  %672 = vst [vmem:[%s424 + $0x3d8] sm:$0xff] %v671
                  %v673 = vld [vmem:[%s423 + $0x7c0] sm:$0xff]
                  %674 = vst [vmem:[%s424 + $0x3e0] sm:$0xff] %v673
                  %v675 = vld [vmem:[%s423 + $0x7d0] sm:$0xff]
                  %676 = vst [vmem:[%s424 + $0x3e8] sm:$0xff] %v675
                  %v677 = vld [vmem:[%s423 + $0x7e0] sm:$0xff]
                  %678 = vst [vmem:[%s424 + $0x3f0] sm:$0xff] %v677
                  %v679 = vld [vmem:[%s423 + $0x7f0] sm:$0xff]
                  %680 = vst [vmem:[%s424 + $0x3f8] sm:$0xff] %v679
                $region52: #{gemm_scale_bn.1} parent=46 // loop_footer
                  %s422 = sadd.s32 1, %s418
                $region53: #{gemm_scale_bn.1} parent=46 // loop_footer_branch
                  %417 = sbr.rel target = $region49
                $region54: #{gemm_scale_bn.1} parent=46 // loop_exit
                  _
              $region47: #{gemm_scale_bn.1} parent=31 // pred_fallthru
                _
              // Predicated region
              $region55: #{gemm_scale_bn.1} parent=31 // pred_check
                _
              $region56: #{gemm_scale_bn.1} parent=31 // pred_check_branch
                %682 = sbr.rel target = $region58
              $region57: #{gemm_scale_bn.1} parent=31 // pred_region
                _
              $region58: #{gemm_scale_bn.1} parent=31 // pred_fallthru
                _
            $region32: #{gemm_scale_bn.1} parent=27 // pred_fallthru
              _
            // Predicated region
            $region33: #{gemm_scale_bn.1} parent=27 // pred_check
              _
            $region34: #{gemm_scale_bn.1} parent=27 // pred_check_branch
              %148 = sbr.rel target = $region36
            $region35: #{gemm_scale_bn.1} parent=27 // pred_region
              %s150 = ssub.s32 256, 1
              loop: start=0, step=1, limit=1
              $region37: #{gemm_scale_bn.1} parent=35 // loop_pre_header
                _
              $region38: #{gemm_scale_bn.1} parent=35 // loop_header
                %s152 = sphi 0, %s156
                %p153 = scmp.ge.s32.totalorder %s152, 1
                %s157 = sphi %s142, %s142
                %s158 = sphi %s139, %s139
              $region39: #{gemm_scale_bn.1} parent=35 // loop_header_branch
                %155 = sbr.rel (%p153) target = $region43
              $region40: #{gemm_scale_bn.1} parent=35 // loop_body
                %v159 = vld [vmem:[%s157] sm:%s150]
                %160 = vst [vmem:[%s158] sm:%s150] %v159
                %v161 = vld [vmem:[%s157 + $0x10] sm:%s150]
                %162 = vst [vmem:[%s158 + $0x8] sm:%s150] %v161
                %v163 = vld [vmem:[%s157 + $0x20] sm:%s150]
                %164 = vst [vmem:[%s158 + $0x10] sm:%s150] %v163
                %v165 = vld [vmem:[%s157 + $0x30] sm:%s150]
                %166 = vst [vmem:[%s158 + $0x18] sm:%s150] %v165
                %v167 = vld [vmem:[%s157 + $0x40] sm:%s150]
                %168 = vst [vmem:[%s158 + $0x20] sm:%s150] %v167
                %v169 = vld [vmem:[%s157 + $0x50] sm:%s150]
                %170 = vst [vmem:[%s158 + $0x28] sm:%s150] %v169
                %v171 = vld [vmem:[%s157 + $0x60] sm:%s150]
                %172 = vst [vmem:[%s158 + $0x30] sm:%s150] %v171
                %v173 = vld [vmem:[%s157 + $0x70] sm:%s150]
                %174 = vst [vmem:[%s158 + $0x38] sm:%s150] %v173
                %v175 = vld [vmem:[%s157 + $0x80] sm:%s150]
                %176 = vst [vmem:[%s158 + $0x40] sm:%s150] %v175
                %v177 = vld [vmem:[%s157 + $0x90] sm:%s150]
                %178 = vst [vmem:[%s158 + $0x48] sm:%s150] %v177
                %v179 = vld [vmem:[%s157 + $0xa0] sm:%s150]
                %180 = vst [vmem:[%s158 + $0x50] sm:%s150] %v179
                %v181 = vld [vmem:[%s157 + $0xb0] sm:%s150]
                %182 = vst [vmem:[%s158 + $0x58] sm:%s150] %v181
                %v183 = vld [vmem:[%s157 + $0xc0] sm:%s150]
                %184 = vst [vmem:[%s158 + $0x60] sm:%s150] %v183
                %v185 = vld [vmem:[%s157 + $0xd0] sm:%s150]
                %186 = vst [vmem:[%s158 + $0x68] sm:%s150] %v185
                %v187 = vld [vmem:[%s157 + $0xe0] sm:%s150]
                %188 = vst [vmem:[%s158 + $0x70] sm:%s150] %v187
                %v189 = vld [vmem:[%s157 + $0xf0] sm:%s150]
                %190 = vst [vmem:[%s158 + $0x78] sm:%s150] %v189
                %v191 = vld [vmem:[%s157 + $0x100] sm:%s150]
                %192 = vst [vmem:[%s158 + $0x80] sm:%s150] %v191
                %v193 = vld [vmem:[%s157 + $0x110] sm:%s150]
                %194 = vst [vmem:[%s158 + $0x88] sm:%s150] %v193
                %v195 = vld [vmem:[%s157 + $0x120] sm:%s150]
                %196 = vst [vmem:[%s158 + $0x90] sm:%s150] %v195
                %v197 = vld [vmem:[%s157 + $0x130] sm:%s150]
                %198 = vst [vmem:[%s158 + $0x98] sm:%s150] %v197
                %v199 = vld [vmem:[%s157 + $0x140] sm:%s150]
                %200 = vst [vmem:[%s158 + $0xa0] sm:%s150] %v199
                %v201 = vld [vmem:[%s157 + $0x150] sm:%s150]
                %202 = vst [vmem:[%s158 + $0xa8] sm:%s150] %v201
                %v203 = vld [vmem:[%s157 + $0x160] sm:%s150]
                %204 = vst [vmem:[%s158 + $0xb0] sm:%s150] %v203
                %v205 = vld [vmem:[%s157 + $0x170] sm:%s150]
                %206 = vst [vmem:[%s158 + $0xb8] sm:%s150] %v205
                %v207 = vld [vmem:[%s157 + $0x180] sm:%s150]
                %208 = vst [vmem:[%s158 + $0xc0] sm:%s150] %v207
                %v209 = vld [vmem:[%s157 + $0x190] sm:%s150]
                %210 = vst [vmem:[%s158 + $0xc8] sm:%s150] %v209
                %v211 = vld [vmem:[%s157 + $0x1a0] sm:%s150]
                %212 = vst [vmem:[%s158 + $0xd0] sm:%s150] %v211
                %v213 = vld [vmem:[%s157 + $0x1b0] sm:%s150]
                %214 = vst [vmem:[%s158 + $0xd8] sm:%s150] %v213
                %v215 = vld [vmem:[%s157 + $0x1c0] sm:%s150]
                %216 = vst [vmem:[%s158 + $0xe0] sm:%s150] %v215
                %v217 = vld [vmem:[%s157 + $0x1d0] sm:%s150]
                %218 = vst [vmem:[%s158 + $0xe8] sm:%s150] %v217
                %v219 = vld [vmem:[%s157 + $0x1e0] sm:%s150]
                %220 = vst [vmem:[%s158 + $0xf0] sm:%s150] %v219
                %v221 = vld [vmem:[%s157 + $0x1f0] sm:%s150]
                %222 = vst [vmem:[%s158 + $0xf8] sm:%s150] %v221
                %v223 = vld [vmem:[%s157 + $0x200] sm:%s150]
                %224 = vst [vmem:[%s158 + $0x100] sm:%s150] %v223
                %v225 = vld [vmem:[%s157 + $0x210] sm:%s150]
                %226 = vst [vmem:[%s158 + $0x108] sm:%s150] %v225
                %v227 = vld [vmem:[%s157 + $0x220] sm:%s150]
                %228 = vst [vmem:[%s158 + $0x110] sm:%s150] %v227
                %v229 = vld [vmem:[%s157 + $0x230] sm:%s150]
                %230 = vst [vmem:[%s158 + $0x118] sm:%s150] %v229
                %v231 = vld [vmem:[%s157 + $0x240] sm:%s150]
                %232 = vst [vmem:[%s158 + $0x120] sm:%s150] %v231
                %v233 = vld [vmem:[%s157 + $0x250] sm:%s150]
                %234 = vst [vmem:[%s158 + $0x128] sm:%s150] %v233
                %v235 = vld [vmem:[%s157 + $0x260] sm:%s150]
                %236 = vst [vmem:[%s158 + $0x130] sm:%s150] %v235
                %v237 = vld [vmem:[%s157 + $0x270] sm:%s150]
                %238 = vst [vmem:[%s158 + $0x138] sm:%s150] %v237
                %v239 = vld [vmem:[%s157 + $0x280] sm:%s150]
                %240 = vst [vmem:[%s158 + $0x140] sm:%s150] %v239
                %v241 = vld [vmem:[%s157 + $0x290] sm:%s150]
                %242 = vst [vmem:[%s158 + $0x148] sm:%s150] %v241
                %v243 = vld [vmem:[%s157 + $0x2a0] sm:%s150]
                %244 = vst [vmem:[%s158 + $0x150] sm:%s150] %v243
                %v245 = vld [vmem:[%s157 + $0x2b0] sm:%s150]
                %246 = vst [vmem:[%s158 + $0x158] sm:%s150] %v245
                %v247 = vld [vmem:[%s157 + $0x2c0] sm:%s150]
                %248 = vst [vmem:[%s158 + $0x160] sm:%s150] %v247
                %v249 = vld [vmem:[%s157 + $0x2d0] sm:%s150]
                %250 = vst [vmem:[%s158 + $0x168] sm:%s150] %v249
                %v251 = vld [vmem:[%s157 + $0x2e0] sm:%s150]
                %252 = vst [vmem:[%s158 + $0x170] sm:%s150] %v251
                %v253 = vld [vmem:[%s157 + $0x2f0] sm:%s150]
                %254 = vst [vmem:[%s158 + $0x178] sm:%s150] %v253
                %v255 = vld [vmem:[%s157 + $0x300] sm:%s150]
                %256 = vst [vmem:[%s158 + $0x180] sm:%s150] %v255
                %v257 = vld [vmem:[%s157 + $0x310] sm:%s150]
                %258 = vst [vmem:[%s158 + $0x188] sm:%s150] %v257
                %v259 = vld [vmem:[%s157 + $0x320] sm:%s150]
                %260 = vst [vmem:[%s158 + $0x190] sm:%s150] %v259
                %v261 = vld [vmem:[%s157 + $0x330] sm:%s150]
                %262 = vst [vmem:[%s158 + $0x198] sm:%s150] %v261
                %v263 = vld [vmem:[%s157 + $0x340] sm:%s150]
                %264 = vst [vmem:[%s158 + $0x1a0] sm:%s150] %v263
                %v265 = vld [vmem:[%s157 + $0x350] sm:%s150]
                %266 = vst [vmem:[%s158 + $0x1a8] sm:%s150] %v265
                %v267 = vld [vmem:[%s157 + $0x360] sm:%s150]
                %268 = vst [vmem:[%s158 + $0x1b0] sm:%s150] %v267
                %v269 = vld [vmem:[%s157 + $0x370] sm:%s150]
                %270 = vst [vmem:[%s158 + $0x1b8] sm:%s150] %v269
                %v271 = vld [vmem:[%s157 + $0x380] sm:%s150]
                %272 = vst [vmem:[%s158 + $0x1c0] sm:%s150] %v271
                %v273 = vld [vmem:[%s157 + $0x390] sm:%s150]
                %274 = vst [vmem:[%s158 + $0x1c8] sm:%s150] %v273
                %v275 = vld [vmem:[%s157 + $0x3a0] sm:%s150]
                %276 = vst [vmem:[%s158 + $0x1d0] sm:%s150] %v275
                %v277 = vld [vmem:[%s157 + $0x3b0] sm:%s150]
                %278 = vst [vmem:[%s158 + $0x1d8] sm:%s150] %v277
                %v279 = vld [vmem:[%s157 + $0x3c0] sm:%s150]
                %280 = vst [vmem:[%s158 + $0x1e0] sm:%s150] %v279
                %v281 = vld [vmem:[%s157 + $0x3d0] sm:%s150]
                %282 = vst [vmem:[%s158 + $0x1e8] sm:%s150] %v281
                %v283 = vld [vmem:[%s157 + $0x3e0] sm:%s150]
                %284 = vst [vmem:[%s158 + $0x1f0] sm:%s150] %v283
                %v285 = vld [vmem:[%s157 + $0x3f0] sm:%s150]
                %286 = vst [vmem:[%s158 + $0x1f8] sm:%s150] %v285
                %v287 = vld [vmem:[%s157 + $0x400] sm:%s150]
                %288 = vst [vmem:[%s158 + $0x200] sm:%s150] %v287
                %v289 = vld [vmem:[%s157 + $0x410] sm:%s150]
                %290 = vst [vmem:[%s158 + $0x208] sm:%s150] %v289
                %v291 = vld [vmem:[%s157 + $0x420] sm:%s150]
                %292 = vst [vmem:[%s158 + $0x210] sm:%s150] %v291
                %v293 = vld [vmem:[%s157 + $0x430] sm:%s150]
                %294 = vst [vmem:[%s158 + $0x218] sm:%s150] %v293
                %v295 = vld [vmem:[%s157 + $0x440] sm:%s150]
                %296 = vst [vmem:[%s158 + $0x220] sm:%s150] %v295
                %v297 = vld [vmem:[%s157 + $0x450] sm:%s150]
                %298 = vst [vmem:[%s158 + $0x228] sm:%s150] %v297
                %v299 = vld [vmem:[%s157 + $0x460] sm:%s150]
                %300 = vst [vmem:[%s158 + $0x230] sm:%s150] %v299
                %v301 = vld [vmem:[%s157 + $0x470] sm:%s150]
                %302 = vst [vmem:[%s158 + $0x238] sm:%s150] %v301
                %v303 = vld [vmem:[%s157 + $0x480] sm:%s150]
                %304 = vst [vmem:[%s158 + $0x240] sm:%s150] %v303
                %v305 = vld [vmem:[%s157 + $0x490] sm:%s150]
                %306 = vst [vmem:[%s158 + $0x248] sm:%s150] %v305
                %v307 = vld [vmem:[%s157 + $0x4a0] sm:%s150]
                %308 = vst [vmem:[%s158 + $0x250] sm:%s150] %v307
                %v309 = vld [vmem:[%s157 + $0x4b0] sm:%s150]
                %310 = vst [vmem:[%s158 + $0x258] sm:%s150] %v309
                %v311 = vld [vmem:[%s157 + $0x4c0] sm:%s150]
                %312 = vst [vmem:[%s158 + $0x260] sm:%s150] %v311
                %v313 = vld [vmem:[%s157 + $0x4d0] sm:%s150]
                %314 = vst [vmem:[%s158 + $0x268] sm:%s150] %v313
                %v315 = vld [vmem:[%s157 + $0x4e0] sm:%s150]
                %316 = vst [vmem:[%s158 + $0x270] sm:%s150] %v315
                %v317 = vld [vmem:[%s157 + $0x4f0] sm:%s150]
                %318 = vst [vmem:[%s158 + $0x278] sm:%s150] %v317
                %v319 = vld [vmem:[%s157 + $0x500] sm:%s150]
                %320 = vst [vmem:[%s158 + $0x280] sm:%s150] %v319
                %v321 = vld [vmem:[%s157 + $0x510] sm:%s150]
                %322 = vst [vmem:[%s158 + $0x288] sm:%s150] %v321
                %v323 = vld [vmem:[%s157 + $0x520] sm:%s150]
                %324 = vst [vmem:[%s158 + $0x290] sm:%s150] %v323
                %v325 = vld [vmem:[%s157 + $0x530] sm:%s150]
                %326 = vst [vmem:[%s158 + $0x298] sm:%s150] %v325
                %v327 = vld [vmem:[%s157 + $0x540] sm:%s150]
                %328 = vst [vmem:[%s158 + $0x2a0] sm:%s150] %v327
                %v329 = vld [vmem:[%s157 + $0x550] sm:%s150]
                %330 = vst [vmem:[%s158 + $0x2a8] sm:%s150] %v329
                %v331 = vld [vmem:[%s157 + $0x560] sm:%s150]
                %332 = vst [vmem:[%s158 + $0x2b0] sm:%s150] %v331
                %v333 = vld [vmem:[%s157 + $0x570] sm:%s150]
                %334 = vst [vmem:[%s158 + $0x2b8] sm:%s150] %v333
                %v335 = vld [vmem:[%s157 + $0x580] sm:%s150]
                %336 = vst [vmem:[%s158 + $0x2c0] sm:%s150] %v335
                %v337 = vld [vmem:[%s157 + $0x590] sm:%s150]
                %338 = vst [vmem:[%s158 + $0x2c8] sm:%s150] %v337
                %v339 = vld [vmem:[%s157 + $0x5a0] sm:%s150]
                %340 = vst [vmem:[%s158 + $0x2d0] sm:%s150] %v339
                %v341 = vld [vmem:[%s157 + $0x5b0] sm:%s150]
                %342 = vst [vmem:[%s158 + $0x2d8] sm:%s150] %v341
                %v343 = vld [vmem:[%s157 + $0x5c0] sm:%s150]
                %344 = vst [vmem:[%s158 + $0x2e0] sm:%s150] %v343
                %v345 = vld [vmem:[%s157 + $0x5d0] sm:%s150]
                %346 = vst [vmem:[%s158 + $0x2e8] sm:%s150] %v345
                %v347 = vld [vmem:[%s157 + $0x5e0] sm:%s150]
                %348 = vst [vmem:[%s158 + $0x2f0] sm:%s150] %v347
                %v349 = vld [vmem:[%s157 + $0x5f0] sm:%s150]
                %350 = vst [vmem:[%s158 + $0x2f8] sm:%s150] %v349
                %v351 = vld [vmem:[%s157 + $0x600] sm:%s150]
                %352 = vst [vmem:[%s158 + $0x300] sm:%s150] %v351
                %v353 = vld [vmem:[%s157 + $0x610] sm:%s150]
                %354 = vst [vmem:[%s158 + $0x308] sm:%s150] %v353
                %v355 = vld [vmem:[%s157 + $0x620] sm:%s150]
                %356 = vst [vmem:[%s158 + $0x310] sm:%s150] %v355
                %v357 = vld [vmem:[%s157 + $0x630] sm:%s150]
                %358 = vst [vmem:[%s158 + $0x318] sm:%s150] %v357
                %v359 = vld [vmem:[%s157 + $0x640] sm:%s150]
                %360 = vst [vmem:[%s158 + $0x320] sm:%s150] %v359
                %v361 = vld [vmem:[%s157 + $0x650] sm:%s150]
                %362 = vst [vmem:[%s158 + $0x328] sm:%s150] %v361
                %v363 = vld [vmem:[%s157 + $0x660] sm:%s150]
                %364 = vst [vmem:[%s158 + $0x330] sm:%s150] %v363
                %v365 = vld [vmem:[%s157 + $0x670] sm:%s150]
                %366 = vst [vmem:[%s158 + $0x338] sm:%s150] %v365
                %v367 = vld [vmem:[%s157 + $0x680] sm:%s150]
                %368 = vst [vmem:[%s158 + $0x340] sm:%s150] %v367
                %v369 = vld [vmem:[%s157 + $0x690] sm:%s150]
                %370 = vst [vmem:[%s158 + $0x348] sm:%s150] %v369
                %v371 = vld [vmem:[%s157 + $0x6a0] sm:%s150]
                %372 = vst [vmem:[%s158 + $0x350] sm:%s150] %v371
                %v373 = vld [vmem:[%s157 + $0x6b0] sm:%s150]
                %374 = vst [vmem:[%s158 + $0x358] sm:%s150] %v373
                %v375 = vld [vmem:[%s157 + $0x6c0] sm:%s150]
                %376 = vst [vmem:[%s158 + $0x360] sm:%s150] %v375
                %v377 = vld [vmem:[%s157 + $0x6d0] sm:%s150]
                %378 = vst [vmem:[%s158 + $0x368] sm:%s150] %v377
                %v379 = vld [vmem:[%s157 + $0x6e0] sm:%s150]
                %380 = vst [vmem:[%s158 + $0x370] sm:%s150] %v379
                %v381 = vld [vmem:[%s157 + $0x6f0] sm:%s150]
                %382 = vst [vmem:[%s158 + $0x378] sm:%s150] %v381
                %v383 = vld [vmem:[%s157 + $0x700] sm:%s150]
                %384 = vst [vmem:[%s158 + $0x380] sm:%s150] %v383
                %v385 = vld [vmem:[%s157 + $0x710] sm:%s150]
                %386 = vst [vmem:[%s158 + $0x388] sm:%s150] %v385
                %v387 = vld [vmem:[%s157 + $0x720] sm:%s150]
                %388 = vst [vmem:[%s158 + $0x390] sm:%s150] %v387
                %v389 = vld [vmem:[%s157 + $0x730] sm:%s150]
                %390 = vst [vmem:[%s158 + $0x398] sm:%s150] %v389
                %v391 = vld [vmem:[%s157 + $0x740] sm:%s150]
                %392 = vst [vmem:[%s158 + $0x3a0] sm:%s150] %v391
                %v393 = vld [vmem:[%s157 + $0x750] sm:%s150]
                %394 = vst [vmem:[%s158 + $0x3a8] sm:%s150] %v393
                %v395 = vld [vmem:[%s157 + $0x760] sm:%s150]
                %396 = vst [vmem:[%s158 + $0x3b0] sm:%s150] %v395
                %v397 = vld [vmem:[%s157 + $0x770] sm:%s150]
                %398 = vst [vmem:[%s158 + $0x3b8] sm:%s150] %v397
                %v399 = vld [vmem:[%s157 + $0x780] sm:%s150]
                %400 = vst [vmem:[%s158 + $0x3c0] sm:%s150] %v399
                %v401 = vld [vmem:[%s157 + $0x790] sm:%s150]
                %402 = vst [vmem:[%s158 + $0x3c8] sm:%s150] %v401
                %v403 = vld [vmem:[%s157 + $0x7a0] sm:%s150]
                %404 = vst [vmem:[%s158 + $0x3d0] sm:%s150] %v403
                %v405 = vld [vmem:[%s157 + $0x7b0] sm:%s150]
                %406 = vst [vmem:[%s158 + $0x3d8] sm:%s150] %v405
                %v407 = vld [vmem:[%s157 + $0x7c0] sm:%s150]
                %408 = vst [vmem:[%s158 + $0x3e0] sm:%s150] %v407
                %v409 = vld [vmem:[%s157 + $0x7d0] sm:%s150]
                %410 = vst [vmem:[%s158 + $0x3e8] sm:%s150] %v409
                %v411 = vld [vmem:[%s157 + $0x7e0] sm:%s150]
                %412 = vst [vmem:[%s158 + $0x3f0] sm:%s150] %v411
                %v413 = vld [vmem:[%s157 + $0x7f0] sm:%s150]
                %414 = vst [vmem:[%s158 + $0x3f8] sm:%s150] %v413
              $region41: #{gemm_scale_bn.1} parent=35 // loop_footer
                %s156 = sadd.s32 1, %s152
              $region42: #{gemm_scale_bn.1} parent=35 // loop_footer_branch
                %151 = sbr.rel target = $region38
              $region43: #{gemm_scale_bn.1} parent=35 // loop_exit
                _
            $region36: #{gemm_scale_bn.1} parent=27 // pred_fallthru
              _
          $region28: #{gemm_scale_bn.1} parent=23 // pred_fallthru
            _
          %683 = vnop
        $region24: #{gemm_scale_bn.1} parent=19 // pred_fallthru
          _
        // Predicated region
        $region59: #{gemm_scale_bn.1} parent=19 // pred_check
          %p684 = pneg %p79
        $region60: #{gemm_scale_bn.1} parent=19 // pred_check_branch
          %686 = sbr.rel (%p684) target = $region62
        $region61: #{gemm_scale_bn.1} parent=19 // pred_region
          %s687 = smul.u32 2, %s12
          %p688 = scmp.lt.s32.totalorder %s687, 3
          %s689 = scalar_select %p688, %s687, 3
          %s690 = smul.addr %s689, 4
          %s691 = scalar_lea.vmem %s2, %s690
          %s692 = smul.u32 2, %s12
        $region62: #{gemm_scale_bn.1} parent=19 // pred_fallthru
          _
      $region20: #{gemm_scale_bn.1} parent=5 // pred_fallthru
        _
      %p693 = scmp.le.s32.totalorder 1, %s12
      %p694 = scmp.lt.s32.totalorder %s12, 3
      %p695 = pnand %p693, %p694
      %p696 = pneg %p695
      // Predicated region
      $region63: #{gemm_scale_bn.1} parent=5 // pred_check
        _
      $region64: #{gemm_scale_bn.1} parent=5 // pred_check_branch
        %698 = sbr.rel (%p695) target = $region66
      $region65: #{gemm_scale_bn.1} parent=5 // pred_region
        %s699 = ssub.s32 %s12, 1
        %s700 = sand.u32 %s46, 1
        %s701 = sand.u32 %s46, 1
        %s702 = smul.addr %s701, 1024
        %s703 = scalar_lea.vmem [#allocation2], %s702
        // Predicated region
        $region67: #{gemm_scale_bn.1} parent=65 // pred_check
          %p704 = pneg %p59
        $region68: #{gemm_scale_bn.1} parent=65 // pred_check_branch
          %706 = sbr.rel (%p704) target = $region70
        $region69: #{gemm_scale_bn.1} parent=65 // pred_region
          _
        $region70: #{gemm_scale_bn.1} parent=65 // pred_fallthru
          _
        %p707 = pneg %p33
        %p708 = pneg %p30
        %s709 = sand.u32 %s46, 1
        %s710 = sand.u32 %s46, 1
        %s711 = smul.addr %s710, 1024
        %s712 = scalar_lea.vmem [#allocation2], %s711
        %p713 = pneg %p59
        %p714 = pneg %p56
        %s715 = smul.u32 2, %s17
        %p716 = scmp.lt.s32.totalorder %s715, 3
        %s717 = scalar_select %p716, %s715, 3
        %s718 = smul.addr %s717, 4
        %s719 = scalar_lea.vmem %s2, %s718
        %p720 = pneg %p85
        %p721 = pneg %p82
        %p722 = pneg %p111
        %p723 = pneg %p108
        %s724 = sand.u32 %s98, 1
        %s725 = scalar_lea.sflag [#allocation4], %s724
        %s726 = sand.u32 %s98, 1
        %s727 = smul.addr %s726, 32
        %s728 = scalar_lea.vmem [#allocation3], %s727
        %s729 = smul.u32 2, %s17
        %s730 = smul.u32 2, %s17
        %p731 = scmp.lt.s32.totalorder %s730, 3
        %s732 = scalar_select %p731, %s730, 3
        %s733 = smul.addr %s732, 4
        %s734 = scalar_lea.vmem %s2, %s733
        %s735 = smul.u32 2, %s17
        %s736 = smul.u32 2, %s17
        %v737 = vld [vmem:[%s0] sm:$0xff]
        %v738 = vld [vmem:[%s0 + $0x8] sm:$0xff]
        %v739 = vld [vmem:[%s0 + $0x10] sm:$0xff]
        %v740 = vld [vmem:[%s0 + $0x18] sm:$0xff]
        %v741 = vld [vmem:[%s0 + $0x20] sm:$0xff]
        %v742 = vld [vmem:[%s0 + $0x28] sm:$0xff]
        %v743 = vld [vmem:[%s0 + $0x30] sm:$0xff]
        %v744 = vld [vmem:[%s0 + $0x38] sm:$0xff]
        %v745 = vld [vmem:[%s703] sm:$0xff]
        %v746 = vld [vmem:[%s703 + $0x8] sm:$0xff]
        %v747 = vld [vmem:[%s703 + $0x10] sm:$0xff]
        %v748 = vld [vmem:[%s703 + $0x18] sm:$0xff]
        %v749 = vld [vmem:[%s703 + $0x20] sm:$0xff]
        %v750 = vld [vmem:[%s703 + $0x28] sm:$0xff]
        %v751 = vld [vmem:[%s703 + $0x30] sm:$0xff]
        %v752 = vld [vmem:[%s703 + $0x38] sm:$0xff]
        %v753 = vld [vmem:[%s703 + $0x40] sm:$0xff]
        %v754 = vld [vmem:[%s703 + $0x48] sm:$0xff]
        %v755 = vld [vmem:[%s703 + $0x50] sm:$0xff]
        %v756 = vld [vmem:[%s703 + $0x58] sm:$0xff]
        %v757 = vld [vmem:[%s703 + $0x60] sm:$0xff]
        %v758 = vld [vmem:[%s703 + $0x68] sm:$0xff]
        %v759 = vld [vmem:[%s703 + $0x70] sm:$0xff]
        %v760 = vld [vmem:[%s703 + $0x78] sm:$0xff]
        %v761 = vld [vmem:[%s703 + $0x80] sm:$0xff]
        %v762 = vld [vmem:[%s703 + $0x88] sm:$0xff]
        %v763 = vld [vmem:[%s703 + $0x90] sm:$0xff]
        %v764 = vld [vmem:[%s703 + $0x98] sm:$0xff]
        %v765 = vld [vmem:[%s703 + $0xa0] sm:$0xff]
        %v766 = vld [vmem:[%s703 + $0xa8] sm:$0xff]
        %v767 = vld [vmem:[%s703 + $0xb0] sm:$0xff]
        %v768 = vld [vmem:[%s703 + $0xb8] sm:$0xff]
        %v769 = vld [vmem:[%s703 + $0xc0] sm:$0xff]
        %v770 = vld [vmem:[%s703 + $0xc8] sm:$0xff]
        %v771 = vld [vmem:[%s703 + $0xd0] sm:$0xff]
        %v772 = vld [vmem:[%s703 + $0xd8] sm:$0xff]
        %v773 = vld [vmem:[%s703 + $0xe0] sm:$0xff]
        %v774 = vld [vmem:[%s703 + $0xe8] sm:$0xff]
        %v775 = vld [vmem:[%s703 + $0xf0] sm:$0xff]
        %v776 = vld [vmem:[%s703 + $0xf8] sm:$0xff]
        %v777 = vld [vmem:[%s703 + $0x100] sm:$0xff]
        %v778 = vld [vmem:[%s703 + $0x108] sm:$0xff]
        %v779 = vld [vmem:[%s703 + $0x110] sm:$0xff]
        %v780 = vld [vmem:[%s703 + $0x118] sm:$0xff]
        %v781 = vld [vmem:[%s703 + $0x120] sm:$0xff]
        %v782 = vld [vmem:[%s703 + $0x128] sm:$0xff]
        %v783 = vld [vmem:[%s703 + $0x130] sm:$0xff]
        %v784 = vld [vmem:[%s703 + $0x138] sm:$0xff]
        %v785 = vld [vmem:[%s703 + $0x140] sm:$0xff]
        %v786 = vld [vmem:[%s703 + $0x148] sm:$0xff]
        %v787 = vld [vmem:[%s703 + $0x150] sm:$0xff]
        %v788 = vld [vmem:[%s703 + $0x158] sm:$0xff]
        %v789 = vld [vmem:[%s703 + $0x160] sm:$0xff]
        %v790 = vld [vmem:[%s703 + $0x168] sm:$0xff]
        %v791 = vld [vmem:[%s703 + $0x170] sm:$0xff]
        %v792 = vld [vmem:[%s703 + $0x178] sm:$0xff]
        %v793 = vld [vmem:[%s703 + $0x180] sm:$0xff]
        %v794 = vld [vmem:[%s703 + $0x188] sm:$0xff]
        %v795 = vld [vmem:[%s703 + $0x190] sm:$0xff]
        %v796 = vld [vmem:[%s703 + $0x198] sm:$0xff]
        %v797 = vld [vmem:[%s703 + $0x1a0] sm:$0xff]
        %v798 = vld [vmem:[%s703 + $0x1a8] sm:$0xff]
        %v799 = vld [vmem:[%s703 + $0x1b0] sm:$0xff]
        %v800 = vld [vmem:[%s703 + $0x1b8] sm:$0xff]
        %v801 = vld [vmem:[%s703 + $0x1c0] sm:$0xff]
        %v802 = vld [vmem:[%s703 + $0x1c8] sm:$0xff]
        %v803 = vld [vmem:[%s703 + $0x1d0] sm:$0xff]
        %v804 = vld [vmem:[%s703 + $0x1d8] sm:$0xff]
        %v805 = vld [vmem:[%s703 + $0x1e0] sm:$0xff]
        %v806 = vld [vmem:[%s703 + $0x1e8] sm:$0xff]
        %v807 = vld [vmem:[%s703 + $0x1f0] sm:$0xff]
        %v808 = vld [vmem:[%s703 + $0x1f8] sm:$0xff]
        %v809 = vld [vmem:[%s703 + $0x200] sm:$0xff]
        %v810 = vld [vmem:[%s703 + $0x208] sm:$0xff]
        %v811 = vld [vmem:[%s703 + $0x210] sm:$0xff]
        %v812 = vld [vmem:[%s703 + $0x218] sm:$0xff]
        %v813 = vld [vmem:[%s703 + $0x220] sm:$0xff]
        %v814 = vld [vmem:[%s703 + $0x228] sm:$0xff]
        %v815 = vld [vmem:[%s703 + $0x230] sm:$0xff]
        %v816 = vld [vmem:[%s703 + $0x238] sm:$0xff]
        %v817 = vld [vmem:[%s703 + $0x240] sm:$0xff]
        %v818 = vld [vmem:[%s703 + $0x248] sm:$0xff]
        %v819 = vld [vmem:[%s703 + $0x250] sm:$0xff]
        %v820 = vld [vmem:[%s703 + $0x258] sm:$0xff]
        %v821 = vld [vmem:[%s703 + $0x260] sm:$0xff]
        %v822 = vld [vmem:[%s703 + $0x268] sm:$0xff]
        %v823 = vld [vmem:[%s703 + $0x270] sm:$0xff]
        %v824 = vld [vmem:[%s703 + $0x278] sm:$0xff]
        %v825 = vld [vmem:[%s703 + $0x280] sm:$0xff]
        %v826 = vld [vmem:[%s703 + $0x288] sm:$0xff]
        %v827 = vld [vmem:[%s703 + $0x290] sm:$0xff]
        %v828 = vld [vmem:[%s703 + $0x298] sm:$0xff]
        %v829 = vld [vmem:[%s703 + $0x2a0] sm:$0xff]
        %v830 = vld [vmem:[%s703 + $0x2a8] sm:$0xff]
        %v831 = vld [vmem:[%s703 + $0x2b0] sm:$0xff]
        %v832 = vld [vmem:[%s703 + $0x2b8] sm:$0xff]
        %v833 = vld [vmem:[%s703 + $0x2c0] sm:$0xff]
        %v834 = vld [vmem:[%s703 + $0x2c8] sm:$0xff]
        %v835 = vld [vmem:[%s703 + $0x2d0] sm:$0xff]
        %v836 = vld [vmem:[%s703 + $0x2d8] sm:$0xff]
        %v837 = vld [vmem:[%s703 + $0x2e0] sm:$0xff]
        %v838 = vld [vmem:[%s703 + $0x2e8] sm:$0xff]
        %v839 = vld [vmem:[%s703 + $0x2f0] sm:$0xff]
        %v840 = vld [vmem:[%s703 + $0x2f8] sm:$0xff]
        %v841 = vld [vmem:[%s703 + $0x300] sm:$0xff]
        %v842 = vld [vmem:[%s703 + $0x308] sm:$0xff]
        %v843 = vld [vmem:[%s703 + $0x310] sm:$0xff]
        %v844 = vld [vmem:[%s703 + $0x318] sm:$0xff]
        %v845 = vld [vmem:[%s703 + $0x320] sm:$0xff]
        %v846 = vld [vmem:[%s703 + $0x328] sm:$0xff]
        %v847 = vld [vmem:[%s703 + $0x330] sm:$0xff]
        %v848 = vld [vmem:[%s703 + $0x338] sm:$0xff]
        %v849 = vld [vmem:[%s703 + $0x340] sm:$0xff]
        %v850 = vld [vmem:[%s703 + $0x348] sm:$0xff]
        %v851 = vld [vmem:[%s703 + $0x350] sm:$0xff]
        %v852 = vld [vmem:[%s703 + $0x358] sm:$0xff]
        %v853 = vld [vmem:[%s703 + $0x360] sm:$0xff]
        %v854 = vld [vmem:[%s703 + $0x368] sm:$0xff]
        %v855 = vld [vmem:[%s703 + $0x370] sm:$0xff]
        %v856 = vld [vmem:[%s703 + $0x378] sm:$0xff]
        %v857 = vld [vmem:[%s703 + $0x380] sm:$0xff]
        %v858 = vld [vmem:[%s703 + $0x388] sm:$0xff]
        %v859 = vld [vmem:[%s703 + $0x390] sm:$0xff]
        %v860 = vld [vmem:[%s703 + $0x398] sm:$0xff]
        %v861 = vld [vmem:[%s703 + $0x3a0] sm:$0xff]
        %v862 = vld [vmem:[%s703 + $0x3a8] sm:$0xff]
        %v863 = vld [vmem:[%s703 + $0x3b0] sm:$0xff]
        %v864 = vld [vmem:[%s703 + $0x3b8] sm:$0xff]
        %v865 = vld [vmem:[%s703 + $0x3c0] sm:$0xff]
        %v866 = vld [vmem:[%s703 + $0x3c8] sm:$0xff]
        %v867 = vld [vmem:[%s703 + $0x3d0] sm:$0xff]
        %v868 = vld [vmem:[%s703 + $0x3d8] sm:$0xff]
        %v869 = vld [vmem:[%s703 + $0x3e0] sm:$0xff]
        %v870 = vld [vmem:[%s703 + $0x3e8] sm:$0xff]
        %v871 = vld [vmem:[%s703 + $0x3f0] sm:$0xff]
        %v872 = vld [vmem:[%s703 + $0x3f8] sm:$0xff]
        %v881 = vunpack.c.l.b16 %v737
        %v882 = vunpack.c.h.b16 %v737
        %v883 = vunpack.c.l.b16 %v738
        %v884 = vunpack.c.h.b16 %v738
        %v885 = vunpack.c.l.b16 %v739
        %v886 = vunpack.c.h.b16 %v739
        %v887 = vunpack.c.l.b16 %v740
        %v888 = vunpack.c.h.b16 %v740
        %v889 = vunpack.c.l.b16 %v741
        %v890 = vunpack.c.h.b16 %v741
        %v891 = vunpack.c.l.b16 %v742
        %v892 = vunpack.c.h.b16 %v742
        %v893 = vunpack.c.l.b16 %v743
        %v894 = vunpack.c.h.b16 %v743
        %v895 = vunpack.c.l.b16 %v744
        %v896 = vunpack.c.h.b16 %v744
        %v897 = vpack.c.b16 %v889, %v881
        %v898 = vpack.c.b16 %v890, %v882
        %v899 = vpack.c.b16 %v891, %v883
        %v900 = vpack.c.b16 %v892, %v884
        %v901 = vpack.c.b16 %v893, %v885
        %v902 = vpack.c.b16 %v894, %v886
        %v903 = vpack.c.b16 %v895, %v887
        %v904 = vpack.c.b16 %v896, %v888
        %v1041 = vunpack.c.l.b16 %v745
        %v1042 = vunpack.c.h.b16 %v745
        %v1043 = vunpack.c.l.b16 %v746
        %v1044 = vunpack.c.h.b16 %v746
        %v1045 = vunpack.c.l.b16 %v747
        %v1046 = vunpack.c.h.b16 %v747
        %v1047 = vunpack.c.l.b16 %v748
        %v1048 = vunpack.c.h.b16 %v748
        %v1049 = vunpack.c.l.b16 %v749
        %v1050 = vunpack.c.h.b16 %v749
        %v1051 = vunpack.c.l.b16 %v750
        %v1052 = vunpack.c.h.b16 %v750
        %v1053 = vunpack.c.l.b16 %v751
        %v1054 = vunpack.c.h.b16 %v751
        %v1055 = vunpack.c.l.b16 %v752
        %v1056 = vunpack.c.h.b16 %v752
        %v1057 = vunpack.c.l.b16 %v753
        %v1058 = vunpack.c.h.b16 %v753
        %v1059 = vunpack.c.l.b16 %v754
        %v1060 = vunpack.c.h.b16 %v754
        %v1061 = vunpack.c.l.b16 %v755
        %v1062 = vunpack.c.h.b16 %v755
        %v1063 = vunpack.c.l.b16 %v756
        %v1064 = vunpack.c.h.b16 %v756
        %v1065 = vunpack.c.l.b16 %v757
        %v1066 = vunpack.c.h.b16 %v757
        %v1067 = vunpack.c.l.b16 %v758
        %v1068 = vunpack.c.h.b16 %v758
        %v1069 = vunpack.c.l.b16 %v759
        %v1070 = vunpack.c.h.b16 %v759
        %v1071 = vunpack.c.l.b16 %v760
        %v1072 = vunpack.c.h.b16 %v760
        %v1073 = vunpack.c.l.b16 %v761
        %v1074 = vunpack.c.h.b16 %v761
        %v1075 = vunpack.c.l.b16 %v762
        %v1076 = vunpack.c.h.b16 %v762
        %v1077 = vunpack.c.l.b16 %v763
        %v1078 = vunpack.c.h.b16 %v763
        %v1079 = vunpack.c.l.b16 %v764
        %v1080 = vunpack.c.h.b16 %v764
        %v1081 = vunpack.c.l.b16 %v765
        %v1082 = vunpack.c.h.b16 %v765
        %v1083 = vunpack.c.l.b16 %v766
        %v1084 = vunpack.c.h.b16 %v766
        %v1085 = vunpack.c.l.b16 %v767
        %v1086 = vunpack.c.h.b16 %v767
        %v1087 = vunpack.c.l.b16 %v768
        %v1088 = vunpack.c.h.b16 %v768
        %v1089 = vunpack.c.l.b16 %v769
        %v1090 = vunpack.c.h.b16 %v769
        %v1091 = vunpack.c.l.b16 %v770
        %v1092 = vunpack.c.h.b16 %v770
        %v1093 = vunpack.c.l.b16 %v771
        %v1094 = vunpack.c.h.b16 %v771
        %v1095 = vunpack.c.l.b16 %v772
        %v1096 = vunpack.c.h.b16 %v772
        %v1097 = vunpack.c.l.b16 %v773
        %v1098 = vunpack.c.h.b16 %v773
        %v1099 = vunpack.c.l.b16 %v774
        %v1100 = vunpack.c.h.b16 %v774
        %v1101 = vunpack.c.l.b16 %v775
        %v1102 = vunpack.c.h.b16 %v775
        %v1103 = vunpack.c.l.b16 %v776
        %v1104 = vunpack.c.h.b16 %v776
        %v1105 = vunpack.c.l.b16 %v777
        %v1106 = vunpack.c.h.b16 %v777
        %v1107 = vunpack.c.l.b16 %v778
        %v1108 = vunpack.c.h.b16 %v778
        %v1109 = vunpack.c.l.b16 %v779
        %v1110 = vunpack.c.h.b16 %v779
        %v1111 = vunpack.c.l.b16 %v780
        %v1112 = vunpack.c.h.b16 %v780
        %v1113 = vunpack.c.l.b16 %v781
        %v1114 = vunpack.c.h.b16 %v781
        %v1115 = vunpack.c.l.b16 %v782
        %v1116 = vunpack.c.h.b16 %v782
        %v1117 = vunpack.c.l.b16 %v783
        %v1118 = vunpack.c.h.b16 %v783
        %v1119 = vunpack.c.l.b16 %v784
        %v1120 = vunpack.c.h.b16 %v784
        %v1121 = vunpack.c.l.b16 %v785
        %v1122 = vunpack.c.h.b16 %v785
        %v1123 = vunpack.c.l.b16 %v786
        %v1124 = vunpack.c.h.b16 %v786
        %v1125 = vunpack.c.l.b16 %v787
        %v1126 = vunpack.c.h.b16 %v787
        %v1127 = vunpack.c.l.b16 %v788
        %v1128 = vunpack.c.h.b16 %v788
        %v1129 = vunpack.c.l.b16 %v789
        %v1130 = vunpack.c.h.b16 %v789
        %v1131 = vunpack.c.l.b16 %v790
        %v1132 = vunpack.c.h.b16 %v790
        %v1133 = vunpack.c.l.b16 %v791
        %v1134 = vunpack.c.h.b16 %v791
        %v1135 = vunpack.c.l.b16 %v792
        %v1136 = vunpack.c.h.b16 %v792
        %v1137 = vunpack.c.l.b16 %v793
        %v1138 = vunpack.c.h.b16 %v793
        %v1139 = vunpack.c.l.b16 %v794
        %v1140 = vunpack.c.h.b16 %v794
        %v1141 = vunpack.c.l.b16 %v795
        %v1142 = vunpack.c.h.b16 %v795
        %v1143 = vunpack.c.l.b16 %v796
        %v1144 = vunpack.c.h.b16 %v796
        %v1145 = vunpack.c.l.b16 %v797
        %v1146 = vunpack.c.h.b16 %v797
        %v1147 = vunpack.c.l.b16 %v798
        %v1148 = vunpack.c.h.b16 %v798
        %v1149 = vunpack.c.l.b16 %v799
        %v1150 = vunpack.c.h.b16 %v799
        %v1151 = vunpack.c.l.b16 %v800
        %v1152 = vunpack.c.h.b16 %v800
        %v1153 = vunpack.c.l.b16 %v801
        %v1154 = vunpack.c.h.b16 %v801
        %v1155 = vunpack.c.l.b16 %v802
        %v1156 = vunpack.c.h.b16 %v802
        %v1157 = vunpack.c.l.b16 %v803
        %v1158 = vunpack.c.h.b16 %v803
        %v1159 = vunpack.c.l.b16 %v804
        %v1160 = vunpack.c.h.b16 %v804
        %v1161 = vunpack.c.l.b16 %v805
        %v1162 = vunpack.c.h.b16 %v805
        %v1163 = vunpack.c.l.b16 %v806
        %v1164 = vunpack.c.h.b16 %v806
        %v1165 = vunpack.c.l.b16 %v807
        %v1166 = vunpack.c.h.b16 %v807
        %v1167 = vunpack.c.l.b16 %v808
        %v1168 = vunpack.c.h.b16 %v808
        %v1169 = vunpack.c.l.b16 %v809
        %v1170 = vunpack.c.h.b16 %v809
        %v1171 = vunpack.c.l.b16 %v810
        %v1172 = vunpack.c.h.b16 %v810
        %v1173 = vunpack.c.l.b16 %v811
        %v1174 = vunpack.c.h.b16 %v811
        %v1175 = vunpack.c.l.b16 %v812
        %v1176 = vunpack.c.h.b16 %v812
        %v1177 = vunpack.c.l.b16 %v813
        %v1178 = vunpack.c.h.b16 %v813
        %v1179 = vunpack.c.l.b16 %v814
        %v1180 = vunpack.c.h.b16 %v814
        %v1181 = vunpack.c.l.b16 %v815
        %v1182 = vunpack.c.h.b16 %v815
        %v1183 = vunpack.c.l.b16 %v816
        %v1184 = vunpack.c.h.b16 %v816
        %v1185 = vunpack.c.l.b16 %v817
        %v1186 = vunpack.c.h.b16 %v817
        %v1187 = vunpack.c.l.b16 %v818
        %v1188 = vunpack.c.h.b16 %v818
        %v1189 = vunpack.c.l.b16 %v819
        %v1190 = vunpack.c.h.b16 %v819
        %v1191 = vunpack.c.l.b16 %v820
        %v1192 = vunpack.c.h.b16 %v820
        %v1193 = vunpack.c.l.b16 %v821
        %v1194 = vunpack.c.h.b16 %v821
        %v1195 = vunpack.c.l.b16 %v822
        %v1196 = vunpack.c.h.b16 %v822
        %v1197 = vunpack.c.l.b16 %v823
        %v1198 = vunpack.c.h.b16 %v823
        %v1199 = vunpack.c.l.b16 %v824
        %v1200 = vunpack.c.h.b16 %v824
        %v1201 = vunpack.c.l.b16 %v825
        %v1202 = vunpack.c.h.b16 %v825
        %v1203 = vunpack.c.l.b16 %v826
        %v1204 = vunpack.c.h.b16 %v826
        %v1205 = vunpack.c.l.b16 %v827
        %v1206 = vunpack.c.h.b16 %v827
        %v1207 = vunpack.c.l.b16 %v828
        %v1208 = vunpack.c.h.b16 %v828
        %v1209 = vunpack.c.l.b16 %v829
        %v1210 = vunpack.c.h.b16 %v829
        %v1211 = vunpack.c.l.b16 %v830
        %v1212 = vunpack.c.h.b16 %v830
        %v1213 = vunpack.c.l.b16 %v831
        %v1214 = vunpack.c.h.b16 %v831
        %v1215 = vunpack.c.l.b16 %v832
        %v1216 = vunpack.c.h.b16 %v832
        %v1217 = vunpack.c.l.b16 %v833
        %v1218 = vunpack.c.h.b16 %v833
        %v1219 = vunpack.c.l.b16 %v834
        %v1220 = vunpack.c.h.b16 %v834
        %v1221 = vunpack.c.l.b16 %v835
        %v1222 = vunpack.c.h.b16 %v835
        %v1223 = vunpack.c.l.b16 %v836
        %v1224 = vunpack.c.h.b16 %v836
        %v1225 = vunpack.c.l.b16 %v837
        %v1226 = vunpack.c.h.b16 %v837
        %v1227 = vunpack.c.l.b16 %v838
        %v1228 = vunpack.c.h.b16 %v838
        %v1229 = vunpack.c.l.b16 %v839
        %v1230 = vunpack.c.h.b16 %v839
        %v1231 = vunpack.c.l.b16 %v840
        %v1232 = vunpack.c.h.b16 %v840
        %v1233 = vunpack.c.l.b16 %v841
        %v1234 = vunpack.c.h.b16 %v841
        %v1235 = vunpack.c.l.b16 %v842
        %v1236 = vunpack.c.h.b16 %v842
        %v1237 = vunpack.c.l.b16 %v843
        %v1238 = vunpack.c.h.b16 %v843
        %v1239 = vunpack.c.l.b16 %v844
        %v1240 = vunpack.c.h.b16 %v844
        %v1241 = vunpack.c.l.b16 %v845
        %v1242 = vunpack.c.h.b16 %v845
        %v1243 = vunpack.c.l.b16 %v846
        %v1244 = vunpack.c.h.b16 %v846
        %v1245 = vunpack.c.l.b16 %v847
        %v1246 = vunpack.c.h.b16 %v847
        %v1247 = vunpack.c.l.b16 %v848
        %v1248 = vunpack.c.h.b16 %v848
        %v1249 = vunpack.c.l.b16 %v849
        %v1250 = vunpack.c.h.b16 %v849
        %v1251 = vunpack.c.l.b16 %v850
        %v1252 = vunpack.c.h.b16 %v850
        %v1253 = vunpack.c.l.b16 %v851
        %v1254 = vunpack.c.h.b16 %v851
        %v1255 = vunpack.c.l.b16 %v852
        %v1256 = vunpack.c.h.b16 %v852
        %v1257 = vunpack.c.l.b16 %v853
        %v1258 = vunpack.c.h.b16 %v853
        %v1259 = vunpack.c.l.b16 %v854
        %v1260 = vunpack.c.h.b16 %v854
        %v1261 = vunpack.c.l.b16 %v855
        %v1262 = vunpack.c.h.b16 %v855
        %v1263 = vunpack.c.l.b16 %v856
        %v1264 = vunpack.c.h.b16 %v856
        %v1265 = vunpack.c.l.b16 %v857
        %v1266 = vunpack.c.h.b16 %v857
        %v1267 = vunpack.c.l.b16 %v858
        %v1268 = vunpack.c.h.b16 %v858
        %v1269 = vunpack.c.l.b16 %v859
        %v1270 = vunpack.c.h.b16 %v859
        %v1271 = vunpack.c.l.b16 %v860
        %v1272 = vunpack.c.h.b16 %v860
        %v1273 = vunpack.c.l.b16 %v861
        %v1274 = vunpack.c.h.b16 %v861
        %v1275 = vunpack.c.l.b16 %v862
        %v1276 = vunpack.c.h.b16 %v862
        %v1277 = vunpack.c.l.b16 %v863
        %v1278 = vunpack.c.h.b16 %v863
        %v1279 = vunpack.c.l.b16 %v864
        %v1280 = vunpack.c.h.b16 %v864
        %v1281 = vunpack.c.l.b16 %v865
        %v1282 = vunpack.c.h.b16 %v865
        %v1283 = vunpack.c.l.b16 %v866
        %v1284 = vunpack.c.h.b16 %v866
        %v1285 = vunpack.c.l.b16 %v867
        %v1286 = vunpack.c.h.b16 %v867
        %v1287 = vunpack.c.l.b16 %v868
        %v1288 = vunpack.c.h.b16 %v868
        %v1289 = vunpack.c.l.b16 %v869
        %v1290 = vunpack.c.h.b16 %v869
        %v1291 = vunpack.c.l.b16 %v870
        %v1292 = vunpack.c.h.b16 %v870
        %v1293 = vunpack.c.l.b16 %v871
        %v1294 = vunpack.c.h.b16 %v871
        %v1295 = vunpack.c.l.b16 %v872
        %v1296 = vunpack.c.h.b16 %v872
        %v1297 = vpack.c.b16 %v1043, %v1041
        %v1298 = vpack.c.b16 %v1044, %v1042
        %v1299 = vpack.c.b16 %v1047, %v1045
        %v1300 = vpack.c.b16 %v1048, %v1046
        %v1301 = vpack.c.b16 %v1051, %v1049
        %v1302 = vpack.c.b16 %v1052, %v1050
        %v1303 = vpack.c.b16 %v1055, %v1053
        %v1304 = vpack.c.b16 %v1056, %v1054
        %v1305 = vpack.c.b16 %v1059, %v1057
        %v1306 = vpack.c.b16 %v1060, %v1058
        %v1307 = vpack.c.b16 %v1063, %v1061
        %v1308 = vpack.c.b16 %v1064, %v1062
        %v1309 = vpack.c.b16 %v1067, %v1065
        %v1310 = vpack.c.b16 %v1068, %v1066
        %v1311 = vpack.c.b16 %v1071, %v1069
        %v1312 = vpack.c.b16 %v1072, %v1070
        %v1313 = vpack.c.b16 %v1075, %v1073
        %v1314 = vpack.c.b16 %v1076, %v1074
        %v1315 = vpack.c.b16 %v1079, %v1077
        %v1316 = vpack.c.b16 %v1080, %v1078
        %v1317 = vpack.c.b16 %v1083, %v1081
        %v1318 = vpack.c.b16 %v1084, %v1082
        %v1319 = vpack.c.b16 %v1087, %v1085
        %v1320 = vpack.c.b16 %v1088, %v1086
        %v1321 = vpack.c.b16 %v1091, %v1089
        %v1322 = vpack.c.b16 %v1092, %v1090
        %v1323 = vpack.c.b16 %v1095, %v1093
        %v1324 = vpack.c.b16 %v1096, %v1094
        %v1325 = vpack.c.b16 %v1099, %v1097
        %v1326 = vpack.c.b16 %v1100, %v1098
        %v1327 = vpack.c.b16 %v1103, %v1101
        %v1328 = vpack.c.b16 %v1104, %v1102
        %v1329 = vpack.c.b16 %v1107, %v1105
        %v1330 = vpack.c.b16 %v1108, %v1106
        %v1331 = vpack.c.b16 %v1111, %v1109
        %v1332 = vpack.c.b16 %v1112, %v1110
        %v1333 = vpack.c.b16 %v1115, %v1113
        %v1334 = vpack.c.b16 %v1116, %v1114
        %v1335 = vpack.c.b16 %v1119, %v1117
        %v1336 = vpack.c.b16 %v1120, %v1118
        %v1337 = vpack.c.b16 %v1123, %v1121
        %v1338 = vpack.c.b16 %v1124, %v1122
        %v1339 = vpack.c.b16 %v1127, %v1125
        %v1340 = vpack.c.b16 %v1128, %v1126
        %v1341 = vpack.c.b16 %v1131, %v1129
        %v1342 = vpack.c.b16 %v1132, %v1130
        %v1343 = vpack.c.b16 %v1135, %v1133
        %v1344 = vpack.c.b16 %v1136, %v1134
        %v1345 = vpack.c.b16 %v1139, %v1137
        %v1346 = vpack.c.b16 %v1140, %v1138
        %v1347 = vpack.c.b16 %v1143, %v1141
        %v1348 = vpack.c.b16 %v1144, %v1142
        %v1349 = vpack.c.b16 %v1147, %v1145
        %v1350 = vpack.c.b16 %v1148, %v1146
        %v1351 = vpack.c.b16 %v1151, %v1149
        %v1352 = vpack.c.b16 %v1152, %v1150
        %v1353 = vpack.c.b16 %v1155, %v1153
        %v1354 = vpack.c.b16 %v1156, %v1154
        %v1355 = vpack.c.b16 %v1159, %v1157
        %v1356 = vpack.c.b16 %v1160, %v1158
        %v1357 = vpack.c.b16 %v1163, %v1161
        %v1358 = vpack.c.b16 %v1164, %v1162
        %v1359 = vpack.c.b16 %v1167, %v1165
        %v1360 = vpack.c.b16 %v1168, %v1166
        %v1361 = vpack.c.b16 %v1171, %v1169
        %v1362 = vpack.c.b16 %v1172, %v1170
        %v1363 = vpack.c.b16 %v1175, %v1173
        %v1364 = vpack.c.b16 %v1176, %v1174
        %v1365 = vpack.c.b16 %v1179, %v1177
        %v1366 = vpack.c.b16 %v1180, %v1178
        %v1367 = vpack.c.b16 %v1183, %v1181
        %v1368 = vpack.c.b16 %v1184, %v1182
        %v1369 = vpack.c.b16 %v1187, %v1185
        %v1370 = vpack.c.b16 %v1188, %v1186
        %v1371 = vpack.c.b16 %v1191, %v1189
        %v1372 = vpack.c.b16 %v1192, %v1190
        %v1373 = vpack.c.b16 %v1195, %v1193
        %v1374 = vpack.c.b16 %v1196, %v1194
        %v1375 = vpack.c.b16 %v1199, %v1197
        %v1376 = vpack.c.b16 %v1200, %v1198
        %v1377 = vpack.c.b16 %v1203, %v1201
        %v1378 = vpack.c.b16 %v1204, %v1202
        %v1379 = vpack.c.b16 %v1207, %v1205
        %v1380 = vpack.c.b16 %v1208, %v1206
        %v1381 = vpack.c.b16 %v1211, %v1209
        %v1382 = vpack.c.b16 %v1212, %v1210
        %v1383 = vpack.c.b16 %v1215, %v1213
        %v1384 = vpack.c.b16 %v1216, %v1214
        %v1385 = vpack.c.b16 %v1219, %v1217
        %v1386 = vpack.c.b16 %v1220, %v1218
        %v1387 = vpack.c.b16 %v1223, %v1221
        %v1388 = vpack.c.b16 %v1224, %v1222
        %v1389 = vpack.c.b16 %v1227, %v1225
        %v1390 = vpack.c.b16 %v1228, %v1226
        %v1391 = vpack.c.b16 %v1231, %v1229
        %v1392 = vpack.c.b16 %v1232, %v1230
        %v1393 = vpack.c.b16 %v1235, %v1233
        %v1394 = vpack.c.b16 %v1236, %v1234
        %v1395 = vpack.c.b16 %v1239, %v1237
        %v1396 = vpack.c.b16 %v1240, %v1238
        %v1397 = vpack.c.b16 %v1243, %v1241
        %v1398 = vpack.c.b16 %v1244, %v1242
        %v1399 = vpack.c.b16 %v1247, %v1245
        %v1400 = vpack.c.b16 %v1248, %v1246
        %v1401 = vpack.c.b16 %v1251, %v1249
        %v1402 = vpack.c.b16 %v1252, %v1250
        %v1403 = vpack.c.b16 %v1255, %v1253
        %v1404 = vpack.c.b16 %v1256, %v1254
        %v1405 = vpack.c.b16 %v1259, %v1257
        %v1406 = vpack.c.b16 %v1260, %v1258
        %v1407 = vpack.c.b16 %v1263, %v1261
        %v1408 = vpack.c.b16 %v1264, %v1262
        %v1409 = vpack.c.b16 %v1267, %v1265
        %v1410 = vpack.c.b16 %v1268, %v1266
        %v1411 = vpack.c.b16 %v1271, %v1269
        %v1412 = vpack.c.b16 %v1272, %v1270
        %v1413 = vpack.c.b16 %v1275, %v1273
        %v1414 = vpack.c.b16 %v1276, %v1274
        %v1415 = vpack.c.b16 %v1279, %v1277
        %v1416 = vpack.c.b16 %v1280, %v1278
        %v1417 = vpack.c.b16 %v1283, %v1281
        %v1418 = vpack.c.b16 %v1284, %v1282
        %v1419 = vpack.c.b16 %v1287, %v1285
        %v1420 = vpack.c.b16 %v1288, %v1286
        %v1421 = vpack.c.b16 %v1291, %v1289
        %v1422 = vpack.c.b16 %v1292, %v1290
        %v1423 = vpack.c.b16 %v1295, %v1293
        %v1424 = vpack.c.b16 %v1296, %v1294
        %1553 = vmatpush.bf16.msra.mxu0 %v1311
        %1554 = vmatpush.bf16.msra.mxu0 %v1309
        %1555 = vmatpush.bf16.msra.mxu0 %v1307
        %1556 = vmatpush.bf16.msra.mxu0 %v1305
        %1557 = vmatpush.bf16.msra.mxu0 %v1303
        %1558 = vmatpush.bf16.msra.mxu0 %v1301
        %1559 = vmatpush.bf16.msra.mxu0 %v1299
        %1560 = vmatpush.bf16.msra.mxu0 %v1297
        %1561 = vmatmul.bf16.gmra.mxu0 %v897
        %v1562 = vpop.f32.mrf.mxu0
        %v1563 = vadd.f32 0.0, %v1562
        %v1564 = vpop.f32.mrf.mxu0
        %v1565 = vadd.f32 0.0, %v1564
        %1566 = vdwg.mxu0
        %1567 = vmatpush.bf16.msra.mxu0 %v1327
        %1568 = vmatpush.bf16.msra.mxu0 %v1325
        %1569 = vmatpush.bf16.msra.mxu0 %v1323
        %1570 = vmatpush.bf16.msra.mxu0 %v1321
        %1571 = vmatpush.bf16.msra.mxu0 %v1319
        %1572 = vmatpush.bf16.msra.mxu0 %v1317
        %1573 = vmatpush.bf16.msra.mxu0 %v1315
        %1574 = vmatpush.bf16.msra.mxu0 %v1313
        %1575 = vmatmul.bf16.gmra.mxu0 %v898
        %v1576 = vpop.f32.mrf.mxu0
        %v1577 = vadd.f32 %v1563, %v1576
        %v1578 = vpop.f32.mrf.mxu0
        %v1579 = vadd.f32 %v1565, %v1578
        %1580 = vdwg.mxu0
        %1581 = vmatpush.bf16.msra.mxu0 %v1343
        %1582 = vmatpush.bf16.msra.mxu0 %v1341
        %1583 = vmatpush.bf16.msra.mxu0 %v1339
        %1584 = vmatpush.bf16.msra.mxu0 %v1337
        %1585 = vmatpush.bf16.msra.mxu0 %v1335
        %1586 = vmatpush.bf16.msra.mxu0 %v1333
        %1587 = vmatpush.bf16.msra.mxu0 %v1331
        %1588 = vmatpush.bf16.msra.mxu0 %v1329
        %1589 = vmatmul.bf16.gmra.mxu0 %v899
        %v1590 = vpop.f32.mrf.mxu0
        %v1591 = vadd.f32 %v1577, %v1590
        %v1592 = vpop.f32.mrf.mxu0
        %v1593 = vadd.f32 %v1579, %v1592
        %1594 = vdwg.mxu0
        %1595 = vmatpush.bf16.msra.mxu0 %v1359
        %1596 = vmatpush.bf16.msra.mxu0 %v1357
        %1597 = vmatpush.bf16.msra.mxu0 %v1355
        %1598 = vmatpush.bf16.msra.mxu0 %v1353
        %1599 = vmatpush.bf16.msra.mxu0 %v1351
        %1600 = vmatpush.bf16.msra.mxu0 %v1349
        %1601 = vmatpush.bf16.msra.mxu0 %v1347
        %1602 = vmatpush.bf16.msra.mxu0 %v1345
        %1603 = vmatmul.bf16.gmra.mxu0 %v900
        %v1604 = vpop.f32.mrf.mxu0
        %v1605 = vadd.f32 %v1591, %v1604
        %v1606 = vpop.f32.mrf.mxu0
        %v1607 = vadd.f32 %v1593, %v1606
        %1608 = vdwg.mxu0
        %1609 = vmatpush.bf16.msra.mxu0 %v1375
        %1610 = vmatpush.bf16.msra.mxu0 %v1373
        %1611 = vmatpush.bf16.msra.mxu0 %v1371
        %1612 = vmatpush.bf16.msra.mxu0 %v1369
        %1613 = vmatpush.bf16.msra.mxu0 %v1367
        %1614 = vmatpush.bf16.msra.mxu0 %v1365
        %1615 = vmatpush.bf16.msra.mxu0 %v1363
        %1616 = vmatpush.bf16.msra.mxu0 %v1361
        %1617 = vmatmul.bf16.gmra.mxu0 %v901
        %v1618 = vpop.f32.mrf.mxu0
        %v1619 = vadd.f32 %v1605, %v1618
        %v1620 = vpop.f32.mrf.mxu0
        %v1621 = vadd.f32 %v1607, %v1620
        %1622 = vdwg.mxu0
        %1623 = vmatpush.bf16.msra.mxu0 %v1391
        %1624 = vmatpush.bf16.msra.mxu0 %v1389
        %1625 = vmatpush.bf16.msra.mxu0 %v1387
        %1626 = vmatpush.bf16.msra.mxu0 %v1385
        %1627 = vmatpush.bf16.msra.mxu0 %v1383
        %1628 = vmatpush.bf16.msra.mxu0 %v1381
        %1629 = vmatpush.bf16.msra.mxu0 %v1379
        %1630 = vmatpush.bf16.msra.mxu0 %v1377
        %1631 = vmatmul.bf16.gmra.mxu0 %v902
        %v1632 = vpop.f32.mrf.mxu0
        %v1633 = vadd.f32 %v1619, %v1632
        %v1634 = vpop.f32.mrf.mxu0
        %v1635 = vadd.f32 %v1621, %v1634
        %1636 = vdwg.mxu0
        %1637 = vmatpush.bf16.msra.mxu0 %v1407
        %1638 = vmatpush.bf16.msra.mxu0 %v1405
        %1639 = vmatpush.bf16.msra.mxu0 %v1403
        %1640 = vmatpush.bf16.msra.mxu0 %v1401
        %1641 = vmatpush.bf16.msra.mxu0 %v1399
        %1642 = vmatpush.bf16.msra.mxu0 %v1397
        %1643 = vmatpush.bf16.msra.mxu0 %v1395
        %1644 = vmatpush.bf16.msra.mxu0 %v1393
        %1645 = vmatmul.bf16.gmra.mxu0 %v903
        %v1646 = vpop.f32.mrf.mxu0
        %v1647 = vadd.f32 %v1633, %v1646
        %v1648 = vpop.f32.mrf.mxu0
        %v1649 = vadd.f32 %v1635, %v1648
        %1650 = vdwg.mxu0
        %1651 = vmatpush.bf16.msra.mxu0 %v1423
        %1652 = vmatpush.bf16.msra.mxu0 %v1421
        %1653 = vmatpush.bf16.msra.mxu0 %v1419
        %1654 = vmatpush.bf16.msra.mxu0 %v1417
        %1655 = vmatpush.bf16.msra.mxu0 %v1415
        %1656 = vmatpush.bf16.msra.mxu0 %v1413
        %1657 = vmatpush.bf16.msra.mxu0 %v1411
        %1658 = vmatpush.bf16.msra.mxu0 %v1409
        %1659 = vmatmul.bf16.gmra.mxu0 %v904
        %v1660 = vpop.f32.mrf.mxu0
        %v1661 = vadd.f32 %v1647, %v1660
        %v1662 = vpop.f32.mrf.mxu0
        %v1663 = vadd.f32 %v1649, %v1662
        %1664 = vdwg.mxu0
        %1665 = vmatpush.bf16.msra.mxu0 %v1312
        %1666 = vmatpush.bf16.msra.mxu0 %v1310
        %1667 = vmatpush.bf16.msra.mxu0 %v1308
        %1668 = vmatpush.bf16.msra.mxu0 %v1306
        %1669 = vmatpush.bf16.msra.mxu0 %v1304
        %1670 = vmatpush.bf16.msra.mxu0 %v1302
        %1671 = vmatpush.bf16.msra.mxu0 %v1300
        %1672 = vmatpush.bf16.msra.mxu0 %v1298
        %1673 = vmatmul.bf16.gmra.mxu0 %v897
        %v1674 = vpop.f32.mrf.mxu0
        %v1675 = vadd.f32 0.0, %v1674
        %v1676 = vpop.f32.mrf.mxu0
        %v1677 = vadd.f32 0.0, %v1676
        %1678 = vdwg.mxu0
        %1679 = vmatpush.bf16.msra.mxu0 %v1328
        %1680 = vmatpush.bf16.msra.mxu0 %v1326
        %1681 = vmatpush.bf16.msra.mxu0 %v1324
        %1682 = vmatpush.bf16.msra.mxu0 %v1322
        %1683 = vmatpush.bf16.msra.mxu0 %v1320
        %1684 = vmatpush.bf16.msra.mxu0 %v1318
        %1685 = vmatpush.bf16.msra.mxu0 %v1316
        %1686 = vmatpush.bf16.msra.mxu0 %v1314
        %1687 = vmatmul.bf16.gmra.mxu0 %v898
        %v1688 = vpop.f32.mrf.mxu0
        %v1689 = vadd.f32 %v1675, %v1688
        %v1690 = vpop.f32.mrf.mxu0
        %v1691 = vadd.f32 %v1677, %v1690
        %1692 = vdwg.mxu0
        %1693 = vmatpush.bf16.msra.mxu0 %v1344
        %1694 = vmatpush.bf16.msra.mxu0 %v1342
        %1695 = vmatpush.bf16.msra.mxu0 %v1340
        %1696 = vmatpush.bf16.msra.mxu0 %v1338
        %1697 = vmatpush.bf16.msra.mxu0 %v1336
        %1698 = vmatpush.bf16.msra.mxu0 %v1334
        %1699 = vmatpush.bf16.msra.mxu0 %v1332
        %1700 = vmatpush.bf16.msra.mxu0 %v1330
        %1701 = vmatmul.bf16.gmra.mxu0 %v899
        %v1702 = vpop.f32.mrf.mxu0
        %v1703 = vadd.f32 %v1689, %v1702
        %v1704 = vpop.f32.mrf.mxu0
        %v1705 = vadd.f32 %v1691, %v1704
        %1706 = vdwg.mxu0
        %1707 = vmatpush.bf16.msra.mxu0 %v1360
        %1708 = vmatpush.bf16.msra.mxu0 %v1358
        %1709 = vmatpush.bf16.msra.mxu0 %v1356
        %1710 = vmatpush.bf16.msra.mxu0 %v1354
        %1711 = vmatpush.bf16.msra.mxu0 %v1352
        %1712 = vmatpush.bf16.msra.mxu0 %v1350
        %1713 = vmatpush.bf16.msra.mxu0 %v1348
        %1714 = vmatpush.bf16.msra.mxu0 %v1346
        %1715 = vmatmul.bf16.gmra.mxu0 %v900
        %v1716 = vpop.f32.mrf.mxu0
        %v1717 = vadd.f32 %v1703, %v1716
        %v1718 = vpop.f32.mrf.mxu0
        %v1719 = vadd.f32 %v1705, %v1718
        %1720 = vdwg.mxu0
        %1721 = vmatpush.bf16.msra.mxu0 %v1376
        %1722 = vmatpush.bf16.msra.mxu0 %v1374
        %1723 = vmatpush.bf16.msra.mxu0 %v1372
        %1724 = vmatpush.bf16.msra.mxu0 %v1370
        %1725 = vmatpush.bf16.msra.mxu0 %v1368
        %1726 = vmatpush.bf16.msra.mxu0 %v1366
        %1727 = vmatpush.bf16.msra.mxu0 %v1364
        %1728 = vmatpush.bf16.msra.mxu0 %v1362
        %1729 = vmatmul.bf16.gmra.mxu0 %v901
        %v1730 = vpop.f32.mrf.mxu0
        %v1731 = vadd.f32 %v1717, %v1730
        %v1732 = vpop.f32.mrf.mxu0
        %v1733 = vadd.f32 %v1719, %v1732
        %1734 = vdwg.mxu0
        %1735 = vmatpush.bf16.msra.mxu0 %v1392
        %1736 = vmatpush.bf16.msra.mxu0 %v1390
        %1737 = vmatpush.bf16.msra.mxu0 %v1388
        %1738 = vmatpush.bf16.msra.mxu0 %v1386
        %1739 = vmatpush.bf16.msra.mxu0 %v1384
        %1740 = vmatpush.bf16.msra.mxu0 %v1382
        %1741 = vmatpush.bf16.msra.mxu0 %v1380
        %1742 = vmatpush.bf16.msra.mxu0 %v1378
        %1743 = vmatmul.bf16.gmra.mxu0 %v902
        %v1744 = vpop.f32.mrf.mxu0
        %v1745 = vadd.f32 %v1731, %v1744
        %v1746 = vpop.f32.mrf.mxu0
        %v1747 = vadd.f32 %v1733, %v1746
        %1748 = vdwg.mxu0
        %1749 = vmatpush.bf16.msra.mxu0 %v1408
        %1750 = vmatpush.bf16.msra.mxu0 %v1406
        %1751 = vmatpush.bf16.msra.mxu0 %v1404
        %1752 = vmatpush.bf16.msra.mxu0 %v1402
        %1753 = vmatpush.bf16.msra.mxu0 %v1400
        %1754 = vmatpush.bf16.msra.mxu0 %v1398
        %1755 = vmatpush.bf16.msra.mxu0 %v1396
        %1756 = vmatpush.bf16.msra.mxu0 %v1394
        %1757 = vmatmul.bf16.gmra.mxu0 %v903
        %v1758 = vpop.f32.mrf.mxu0
        %v1759 = vadd.f32 %v1745, %v1758
        %v1760 = vpop.f32.mrf.mxu0
        %v1761 = vadd.f32 %v1747, %v1760
        %1762 = vdwg.mxu0
        %1763 = vmatpush.bf16.msra.mxu0 %v1424
        %1764 = vmatpush.bf16.msra.mxu0 %v1422
        %1765 = vmatpush.bf16.msra.mxu0 %v1420
        %1766 = vmatpush.bf16.msra.mxu0 %v1418
        %1767 = vmatpush.bf16.msra.mxu0 %v1416
        %1768 = vmatpush.bf16.msra.mxu0 %v1414
        %1769 = vmatpush.bf16.msra.mxu0 %v1412
        %1770 = vmatpush.bf16.msra.mxu0 %v1410
        %1771 = vmatmul.bf16.gmra.mxu0 %v904
        %v1772 = vpop.f32.mrf.mxu0
        %v1773 = vadd.f32 %v1759, %v1772
        %v1774 = vpop.f32.mrf.mxu0
        %v1775 = vadd.f32 %v1761, %v1774
        %1776 = vdwg.mxu0
        %v1777 = vld [vmem:[%s734] sm:$0x77]
        %v1778 = vadd.f32 %v1661, %v1663
        %v1779 = vrot.slane %v1778, 4
        %v1780 = vadd.f32 %v1778, %v1779
        %v1781 = vrot.slane %v1780, 2
        %v1782 = vadd.f32 %v1780, %v1781
        %v1783 = vrot.slane %v1782, 1
        %v1784 = vadd.f32 %v1782, %v1783
        %v1785 = vadd.f32 %v1773, %v1775
        %v1786 = vrot.slane %v1785, 4
        %v1787 = vadd.f32 %v1785, %v1786
        %v1788 = vrot.slane %v1787, 2
        %v1789 = vadd.f32 %v1787, %v1788
        %v1790 = vrot.slane %v1789, 1
        %v1791 = vadd.f32 %v1789, %v1790
        %v1792 = vmul.f32 %v1784, 0.0625
        %v1793 = vmul.f32 %v1791, 0.0625
        %v1794 = vsub.f32 %v1661, %v1792
        %v1795 = vsub.f32 %v1773, %v1793
        %v1796 = vsub.f32 %v1663, %v1792
        %v1797 = vsub.f32 %v1775, %v1793
        %v1798 = vmul.f32 %v1794, %v1794
        %v1799 = vmul.f32 %v1795, %v1795
        %v1800 = vmul.f32 %v1796, %v1796
        %v1801 = vmul.f32 %v1797, %v1797
        %v1802 = vadd.f32 %v1798, %v1800
        %v1803 = vrot.slane %v1802, 4
        %v1804 = vadd.f32 %v1802, %v1803
        %v1805 = vrot.slane %v1804, 2
        %v1806 = vadd.f32 %v1804, %v1805
        %v1807 = vrot.slane %v1806, 1
        %v1808 = vadd.f32 %v1806, %v1807
        %v1809 = vadd.f32 %v1799, %v1801
        %v1810 = vrot.slane %v1809, 4
        %v1811 = vadd.f32 %v1809, %v1810
        %v1812 = vrot.slane %v1811, 2
        %v1813 = vadd.f32 %v1811, %v1812
        %v1814 = vrot.slane %v1813, 1
        %v1815 = vadd.f32 %v1813, %v1814
        %v1816 = vmul.f32 %v1808, 0.0625
        %v1817 = vmul.f32 %v1815, 0.0625
        %v1819 = vrot.slane %v1777, 5
        %v1820 = vrot.slane %v1819, 4
        %v1822 = vmul.f32 %v1777, %v1820
        %v1823 = vmul.f32 %v1777, %v1777
        %v1826 = vrot.slane %v1817, 4
        %vm1827 = vcmask 1043456
        %v1828 = vsel %vm1827, %v1816, %v1826
        %v1830 = vmul.f32 %v1823, %v1828
        %v1831 = vadd.f32 %v1830, 1e-05
        %v1832 = vrsqrt.pop %v1831
        %v1833 = vmul.f32 %v1832, %v1831
        %v1834 = vmul.f32 %v1833, %v1832
        %v1835 = vmul.f32 0.5, %v1834
        %v1836 = vsub.f32 1.5, %v1835
        %v1837 = vmul.f32 %v1832, %v1836
        %vm1838 = vweird.f32 %v1831
        %vm1839 = vweird.f32 %v1832
        %vm1840 = vmor %vm1838, %vm1839
        %v1841 = vsel %vm1840, %v1832, %v1837
        %v1842 = vmul.f32 %v1822, %v1841
        %v1844 = vperm.slane %v1842, 0
        %v1845 = vperm.slane %v1842, 4
        %v1848 = vperm.slane %v1844, 0
        %v1849 = vperm.slane %v1845, 0
        %v1850 = vmul.f32 %v1794, %v1848
        %v1851 = vmul.f32 %v1795, %v1849
        %v1852 = vmul.f32 %v1796, %v1848
        %v1853 = vmul.f32 %v1797, %v1849
        %v1854 = vperm.slane %v1777, 2
        %v1855 = vperm.slane %v1777, 6
        %v1858 = vperm.slane %v1854, 2
        %v1859 = vperm.slane %v1855, 2
        %v1860 = vadd.f32 %v1850, %v1858
        %v1861 = vadd.f32 %v1851, %v1859
        %v1862 = vadd.f32 %v1852, %v1858
        %v1863 = vadd.f32 %v1853, %v1859
        %1864 = vst [vmem:[%s728] sm:$0xff] %v1860
        %1865 = vst [vmem:[%s728 + $0x8] sm:$0xff] %v1861
        %1866 = vst [vmem:[%s728 + $0x10] sm:$0xff] %v1862
        %1867 = vst [vmem:[%s728 + $0x18] sm:$0xff] %v1863
        %s1868 = sand.u32 %s98, 1
        %s1869 = scalar_lea.sflag [#allocation4], %s1868
        %s1870 = sand.u32 %s98, 1
        %s1871 = smul.addr %s1870, 32
        %s1872 = scalar_lea.vmem [#allocation3], %s1871
        // Predicated region
        $region71: #{gemm_scale_bn.1} parent=65 // pred_check
          %p1873 = pneg %p108
        $region72: #{gemm_scale_bn.1} parent=65 // pred_check_branch
          %1875 = sbr.rel (%p1873) target = $region74
        $region73: #{gemm_scale_bn.1} parent=65 // pred_region
          %s1876 = smul.u32 2, %s17
          %1878 = vsyncadd %s1869, 0
          %s1879 = smul.addr %s1876, 8
          %s1880 = scalar_lea.hbm %s3, %s1879
          %s1881 = sshll.u32 %s1872, 4
          %s1882 = int_to_ptr.vmem [resolvable:$true] %s1881
          %s1883 = sshll.u32 %s1880, 4
          %s1884 = int_to_ptr.hbm [resolvable:$true] %s1883
          %1889 = dma.vmem_to_hbm [thread:$0]  %s1882, 512, %s1884, %s1869, 256, 512, 16
        $region74: #{gemm_scale_bn.1} parent=65 // pred_fallthru
          _
      $region66: #{gemm_scale_bn.1} parent=5 // pred_fallthru
        _
      %p1890 = scmp.le.s32.totalorder 2, %s12
      // Predicated region
      $region75: #{gemm_scale_bn.1} parent=5 // pred_check
        %p1891 = pneg %p1890
      $region76: #{gemm_scale_bn.1} parent=5 // pred_check_branch
        %1893 = sbr.rel (%p1891) target = $region78
      $region77: #{gemm_scale_bn.1} parent=5 // pred_region
        %s1894 = ssub.s32 %s12, 2
        // Predicated region
        $region79: #{gemm_scale_bn.1} parent=77 // pred_check
          %p1895 = pneg %p114
        $region80: #{gemm_scale_bn.1} parent=77 // pred_check_branch
          %1897 = sbr.rel (%p1895) target = $region82
        $region81: #{gemm_scale_bn.1} parent=77 // pred_region
          %s1898 = sand.u32 %s99, 1
          %s1899 = scalar_lea.sflag [#allocation4], %s1898
          %s1900 = sand.u32 %s99, 1
          %s1901 = smul.addr %s1900, 32
          %s1902 = scalar_lea.vmem [#allocation3], %s1901
          %1904 = dma.done %s1899, 512
        $region82: #{gemm_scale_bn.1} parent=77 // pred_fallthru
          _
      $region78: #{gemm_scale_bn.1} parent=5 // pred_fallthru
        _
    $region6: #{gemm_scale_bn.1} parent=1 // loop_footer
      %s16 = sadd.s32 1, %s12
    $region7: #{gemm_scale_bn.1} parent=1 // loop_footer_branch
      %11 = sbr.rel target = $region3
    $region8: #{gemm_scale_bn.1} parent=1 // loop_exit
      _
    %1905 = vsyncpa [#allocation4], 1
    %s1906 = scalar_lea.sflag [#allocation4], 1
    %1907 = vsyncpa %s1906, 1

</llo_original>
